<compile_context>
chip_gen: v7x
topology: tpu7x:2x2x1
jax: 0.10.0
libtpu: 0.0.40
codegen_flags: <defaults>
</compile_context>

<pallas_src>
import functools
import math

import jax
import jax.numpy as jnp
from jax import lax
from jax.experimental import pallas as pl
from jax.experimental.pallas import tpu as pltpu

_F32 = jnp.float32
_GELU_C = math.sqrt(2.0 / math.pi)
_MASK_VALUE = -1e9


# ----------------------------------------------------------------------------- helpers
def _layernorm(x, alpha, bias, d, eps=1e-6):
    # torch Norm: alpha * (x - mean) / (std + eps) + bias, std unbiased (N-1).
    mean = jnp.mean(x, axis=-1, keepdims=True)
    xc = x - mean
    var = jnp.sum(xc * xc, axis=-1, keepdims=True) * (1.0 / (d - 1))
    # eps is added to std (not var), so plain rsqrt cannot be used; keep the exact
    # reciprocal here (strict validation path); softmax uses the approx EUP reciprocal.
    inv = pl.reciprocal(jnp.sqrt(var) + eps, approx=False)
    return alpha * (xc * inv) + bias


def _gelu(x):
    return 0.5 * x * (1.0 + jnp.tanh(_GELU_C * (x + 0.044715 * x * x * x)))


def _seq_tile(S, pref):
    """Largest multiple of 8 <= pref dividing S (or S itself)."""
    if S <= pref:
        return S
    t = max(8, (pref // 8) * 8)
    while t >= 8:
        if S % t == 0:
            return t
        t -= 8
    return S


def _vmem_limit_bytes():
    """Generation-aware scoped-VMEM request (v7x only has 64 MiB/TC -> leave headroom)."""
    cap = 128 * 1024 * 1024
    if hasattr(pltpu, "get_tpu_info"):
        try:  # narrow probe: hardware info only -- never hides kernel compile errors
            cap = int(getattr(pltpu.get_tpu_info(), "vmem_capacity_bytes", cap))
        except Exception:
            pass
    return max(32 * 1024 * 1024, min((cap * 3) // 4, 96 * 1024 * 1024))


@functools.lru_cache(maxsize=None)
def _supports_single_buffering():
    """Feature-probe pl.Buffered(1) for grid-invariant operands.

    Kept as a tiny isolated probe so failures of the *real* kernels still surface
    (review feedback: no broad try/except around the actual pallas_call).
    """
    if not hasattr(pl, "Buffered"):
        return False

    def _probe(w_ref, o_ref):
        o_ref[...] = w_ref[...] * 2.0

    try:
        fn = pl.pallas_call(
            _probe,
            out_shape=jax.ShapeDtypeStruct((8, 128), jnp.float32),
            grid_spec=pltpu.PrefetchScalarGridSpec(
                num_scalar_prefetch=0,
                grid=(2,),
                in_specs=[pl.BlockSpec((8, 128), lambda i: (0, 0),
                                       pipeline_mode=pl.Buffered(1))],
                out_specs=pl.BlockSpec((8, 128), lambda i: (0, 0)),
            ),
        )
        jax.block_until_ready(fn(jnp.ones((8, 128), jnp.float32)))
        return True
    except Exception:
        return False


def _resident(shape, single_buffer):
    """Grid-invariant operand: constant index map, single-buffered when supported."""
    imap = lambda *_, n=len(shape): (0,) * n
    if single_buffer:
        return pl.BlockSpec(shape, imap, pipeline_mode=pl.Buffered(1))
    return pl.BlockSpec(shape, imap)


# ---------------------------------------------------------------- call 1: norm_1 + QKV
def _build_qkv_call(B, S, D, H, ts, mm_dtype, single_buffer, vmem_limit):
    DK = D // H
    n_s = S // ts

    def kernel(x_ref, a1_ref, b1_ref, wq_ref, bq_ref, wk_ref, bk_ref, wv_ref, bv_ref,
               q_ref, k_ref, v_ref):
        x = x_ref[0].astype(_F32)                               # (ts, D)
        x2 = _layernorm(x, a1_ref[...], b1_ref[...], D)
        x2m = x2.astype(mm_dtype)

        def project(w_ref, b_ref, out_ref):
            y = jnp.dot(x2m, w_ref[...], preferred_element_type=_F32) + b_ref[...]
            y = y.astype(mm_dtype)
            # One-time head split into the (B, H, S, DK) layout consumed by the flash
            # kernel; the attention loop itself never re-splits / concatenates heads.
            for h in range(H):                                  # static, amortized
                out_ref[0, h] = y[:, h * DK:(h + 1) * DK]

        project(wq_ref, bq_ref, q_ref)      # 1/sqrt(dk) already folded into Wq / bq
        project(wk_ref, bk_ref, k_ref)
        project(wv_ref, bv_ref, v_ref)

    mm_sz = jnp.dtype(mm_dtype).itemsize
    cost = pl.CostEstimate(
        flops=int(6 * B * S * D * D),
        transcendentals=int(B * S),
        bytes_accessed=int(4 * B * S * D + 3 * D * D * mm_sz + 3 * B * S * D * mm_sz),
    )
    return pl.pallas_call(
        kernel,
        out_shape=tuple(jax.ShapeDtypeStruct((B, H, S, DK), mm_dtype) for _ in range(3)),
        grid_spec=pltpu.PrefetchScalarGridSpec(
            num_scalar_prefetch=0,
            grid=(B, n_s),
            in_specs=[
                pl.BlockSpec((1, ts, D), lambda b, s: (b, s, 0)),
                _resident((1, D), single_buffer), _resident((1, D), single_buffer),
                _resident((D, D), single_buffer), _resident((1, D), single_buffer),
                _resident((D, D), single_buffer), _resident((1, D), single_buffer),
                _resident((D, D), single_buffer), _resident((1, D), single_buffer),
            ],
            out_specs=tuple(pl.BlockSpec((1, H, ts, DK), lambda b, s: (b, 0, s, 0))
                            for _ in range(3)),
        ),
        compiler_params=pltpu.CompilerParams(
            dimension_semantics=("parallel", "parallel"),
            vmem_limit_bytes=vmem_limit,
        ),
        cost_estimate=cost,
    )


# -------------------------------------------------- call 2: flash attention + residual
def _build_attn_call(B, S, D, H, tq, tkv, mm_dtype, out_dtype, causal,
                     approx_recip, single_buffer, vmem_limit):
    DK = D // H
    n_q, n_kv = S // tq, S // tkv

    def kernel(xres_ref, q_ref, k_ref, v_ref, wo_ref, bo_ref, o_ref,
               m_ref, l_ref, acc_ref):
        qi = pl.program_id(1)
        ki = pl.program_id(2)

        @pl.when(ki == 0)
        def _init():
            m_ref[...] = jnp.full_like(m_ref, -jnp.inf)
            l_ref[...] = jnp.zeros_like(l_ref)
            acc_ref[...] = jnp.zeros_like(acc_ref)

        def attend(apply_mask):
            q = q_ref[0]                                        # (H, tq, DK)
            k = k_ref[0]                                        # (H, tkv, DK)
            v = v_ref[0]
            s = jnp.einsum("hqd,hkd->hqk", q, k, preferred_element_type=_F32)
            if apply_mask:
                # Causal bias generated in-kernel (no (S, S) mask DMA'd from HBM).
                row = qi * tq + lax.broadcasted_iota(jnp.int32, s.shape, 1)
                col = ki * tkv + lax.broadcasted_iota(jnp.int32, s.shape, 2)
                s = jnp.where(row >= col, s, _MASK_VALUE)
            m_prev = m_ref[...]
            m_new = jnp.maximum(m_prev, jnp.max(s, axis=-1, keepdims=True))
            alpha = jnp.exp(m_prev - m_new)
            p = jnp.exp(s - m_new)
            l_ref[...] = alpha * l_ref[...] + jnp.sum(p, axis=-1, keepdims=True)
            acc_ref[...] = alpha * acc_ref[...] + jnp.einsum(
                "hqk,hkd->hqd", p.astype(mm_dtype), v, preferred_element_type=_F32)
            m_ref[...] = m_new

        if causal:
            # Causal block skipping: kv tiles strictly above the diagonal are skipped.
            @pl.when(ki * tkv <= qi * tq + (tq - 1))
            def _():
                attend(apply_mask=True)
            # TODO(synk): fully-visible below-diagonal blocks could skip the iota mask.
        else:
            attend(apply_mask=False)

        @pl.when(ki == pl.num_programs(2) - 1)
        def _finalize():
            # Softmax normalization via the EUP reciprocal; output projection done
            # per-head against Wo stored as (H, DK, D) -- no head-concat relayout.
            y = xres_ref[0].astype(_F32) + bo_ref[...]          # residual + out bias
            for h in range(H):                                  # static
                oh = acc_ref[h] * pl.reciprocal(l_ref[h], approx=approx_recip)
                y = y + jnp.dot(oh.astype(mm_dtype), wo_ref[h],
                                preferred_element_type=_F32)
            o_ref[0] = y.astype(o_ref.dtype)

    mm_sz = jnp.dtype(mm_dtype).itemsize
    cost = pl.CostEstimate(
        flops=int(4 * B * S * S * D + 2 * B * S * D * D),
        transcendentals=int(B * H * S * S),
        bytes_accessed=int(B * S * D * (3 * mm_sz + 2 * 4) + D * D * mm_sz + 4 * D),
    )
    return pl.pallas_call(
        kernel,
        out_shape=jax.ShapeDtypeStruct((B, S, D), out_dtype),
        grid_spec=pltpu.PrefetchScalarGridSpec(
            num_scalar_prefetch=0,
            grid=(B, n_q, n_kv),
            in_specs=[
                pl.BlockSpec((1, tq, D), lambda b, q, k: (b, q, 0)),        # residual x
                pl.BlockSpec((1, H, tq, DK), lambda b, q, k: (b, 0, q, 0)),  # Q
                pl.BlockSpec((1, H, tkv, DK), lambda b, q, k: (b, 0, k, 0)),  # K
                pl.BlockSpec((1, H, tkv, DK), lambda b, q, k: (b, 0, k, 0)),  # V
                _resident((H, DK, D), single_buffer),                        # Wo (per-head)
                _resident((1, D), single_buffer),                            # bo
            ],
            out_specs=pl.BlockSpec((1, tq, D), lambda b, q, k: (b, q, 0)),
            scratch_shapes=[
                pltpu.VMEM((H, tq, 1), _F32),    # running max
                pltpu.VMEM((H, tq, 1), _F32),    # running denom
                pltpu.VMEM((H, tq, DK), _F32),   # running numerator
            ],
        ),
        compiler_params=pltpu.CompilerParams(
            dimension_semantics=("parallel", "parallel", "arbitrary"),
            vmem_limit_bytes=vmem_limit,
        ),
        cost_estimate=cost,
    )


# ----------------------------------------------------------- call 3: norm_2 + FFN
def _build_ffn_call(B, S, D, DFF, ts, mm_dtype, out_dtype, single_buffer, vmem_limit):
    n_s = S // ts

    def kernel(x_ref, a2_ref, b2n_ref, w1_ref, b1_ref, w2_ref, b2_ref, o_ref):
        x = x_ref[0].astype(_F32)                               # (ts, D)
        x2 = _layernorm(x, a2_ref[...], b2n_ref[...], D)
        h = jnp.dot(x2.astype(mm_dtype), w1_ref[...],
                    preferred_element_type=_F32) + b1_ref[...]
        h = _gelu(h)                                            # dropout: identity
        y = jnp.dot(h.astype(mm_dtype), w2_ref[...],
                    preferred_element_type=_F32) + b2_ref[...]
        o_ref[0] = (x + y).astype(o_ref.dtype)                  # dropout2: identity

    mm_sz = jnp.dtype(mm_dtype).itemsize
    cost = pl.CostEstimate(
        flops=int(4 * B * S * D * DFF),
        transcendentals=int(B * S * DFF + B * S),
        bytes_accessed=int(2 * B * S * D * 4 + 2 * D * DFF * mm_sz),
    )
    return pl.pallas_call(
        kernel,
        out_shape=jax.ShapeDtypeStruct((B, S, D), out_dtype),
        grid_spec=pltpu.PrefetchScalarGridSpec(
            num_scalar_prefetch=0,
            grid=(B, n_s),
            in_specs=[
                pl.BlockSpec((1, ts, D), lambda b, s: (b, s, 0)),
                _resident((1, D), single_buffer), _resident((1, D), single_buffer),
                _resident((D, DFF), single_buffer), _resident((1, DFF), single_buffer),
                _resident((DFF, D), single_buffer), _resident((1, D), single_buffer),
            ],
            out_specs=pl.BlockSpec((1, ts, D), lambda b, s: (b, s, 0)),
        ),
        compiler_params=pltpu.CompilerParams(
            dimension_semantics=("parallel", "parallel"),
            vmem_limit_bytes=vmem_limit,
        ),
        cost_estimate=cost,
    )


# --------------------------------------------------------------------------- wrapper
def prepare_params(params, num_heads, mm_dtype=jnp.bfloat16):
    """One-time parameter prep: fold 1/sqrt(dk) into Wq/bq, reshape Wo per-head,
    cast matmul weights to the MXU dtype (biases / norm params stay f32)."""
    (n1a, n1b, wq, bq, wk, bk, wv, bv, wo, bo, n2a, n2b, w1, b1, w2, b2) = params
    D = wq.shape[0]
    dk = D // num_heads
    scale = 1.0 / math.sqrt(dk)
    mm = mm_dtype
    return (
        n1a.astype(_F32), n1b.astype(_F32),
        (wq * scale).astype(mm), (bq * scale).astype(_F32),
        wk.astype(mm), bk.astype(_F32),
        wv.astype(mm), bv.astype(_F32),
        wo.reshape(num_heads, dk, D).astype(mm), bo.astype(_F32),
        n2a.astype(_F32), n2b.astype(_F32),
        w1.astype(mm), b1.astype(_F32),
        w2.astype(mm), b2.astype(_F32),
    )


def decoder_layer(x, prepared_params, num_heads, *, causal=True,
                  q_tile=128, kv_tile=128, seq_tile=256, approx_softmax_recip=True):
    """Pre-norm decoder block: x + MHA(norm_1(x)) then + FFN(norm_2(.)).

    `prepared_params` must come from prepare_params().  Does NOT block; caller decides.
    TODO(synk): only causal (or no) masking is supported in-kernel; arbitrary padding
    masks would need an extra additive-bias operand.
    """
    B, S, D = x.shape
    (n1a, n1b, wq, bq, wk, bk, wv, bv, wo_h, bo,
     n2a, n2b, w1, b1, w2, b2) = prepared_params
    mm_dtype = wq.dtype
    d_ff = w1.shape[1]

    single_buf = _supports_single_buffering()
    vmem_limit = _vmem_limit_bytes()
    ts = _seq_tile(S, seq_tile)
    tq = _seq_tile(S, q_tile)
    tkv = _seq_tile(S, kv_tile)

    qkv_call = _build_qkv_call(B, S, D, num_heads, ts, mm_dtype, single_buf, vmem_limit)
    q, k, v = qkv_call(x, n1a, n1b, wq, bq, wk, bk, wv, bv)

    attn_call = _build_attn_call(B, S, D, num_heads, tq, tkv, mm_dtype, x.dtype,
                                 causal, approx_softmax_recip, single_buf, vmem_limit)
    x_attn = attn_call(x, q, k, v, wo_h, bo)

    ffn_call = _build_ffn_call(B, S, D, d_ff, ts, mm_dtype, x.dtype,
                               single_buf, vmem_limit)
    return ffn_call(x_attn, n2a, n2b, w1, b1, w2, b2)


# ------------------------------------------------------------------------- reference
def reference(x, params, num_heads, eps=1e-6):
    """Pure-JAX f32 replica of the PyTorch DecoderLayer (causal look-ahead mask)."""
    (n1a, n1b, wq, bq, wk, bk, wv, bv, wo, bo, n2a, n2b, w1, b1, w2, b2) = params
    B, S, D = x.shape
    dk = D // num_heads
    mask = jnp.tril(jnp.ones((S, S), dtype=jnp.float32))

    def norm(t, a, b):
        mean = jnp.mean(t, axis=-1, keepdims=True)
        xc = t - mean
        std = jnp.sqrt(jnp.sum(xc * xc, axis=-1, keepdims=True) / (D - 1))
        return a * xc / (std + eps) + b

    def gelu(t):
        return 0.5 * t * (1 + jnp.tanh(math.sqrt(2 / math.pi) * (t + 0.044715 * t ** 3)))

    x2 = norm(x, n1a, n1b)
    q = (x2 @ wq + bq).reshape(B, S, num_heads, dk).transpose(0, 2, 1, 3)
    k = (x2 @ wk + bk).reshape(B, S, num_heads, dk).transpose(0, 2, 1, 3)
    v = (x2 @ wv + bv).reshape(B, S, num_heads, dk).transpose(0, 2, 1, 3)
    scores = jnp.einsum("bhqd,bhkd->bhqk", q, k) / math.sqrt(dk)
    scores = jnp.where(mask[None, None] == 0, -1e9, scores)
    p = jax.nn.softmax(scores, axis=-1)
    attn = jnp.einsum("bhqk,bhkd->bhqd", p, v).transpose(0, 2, 1, 3).reshape(B, S, D)
    x = x + (attn @ wo + bo)
    x2 = norm(x, n2a, n2b)
    return x + (gelu(x2 @ w1 + b1) @ w2 + b2)


# ------------------------------------------------------------------------------ main
if __name__ == "__main__":
    # S=16 with 8-row q/kv tiles so the flash path (online softmax across kv blocks,
    # causal block skipping, diagonal in-kernel masking) is actually exercised.
    B, S, D, H, D_FF = 2, 16, 32, 4, 1024

    key = jax.random.PRNGKey(0)
    ks = jax.random.split(key, 8)
    x = jax.random.normal(ks[0], (B, S, D), dtype=jnp.float32)

    def w(k, shape):
        return (0.02 * jax.random.normal(k, shape)).astype(jnp.float32)

    # nn.Linear weights pre-transposed to (in, out); biases as (1, out).
    params = (
        jnp.ones((1, D), jnp.float32), jnp.zeros((1, D), jnp.float32),   # norm_1
        w(ks[1], (D, D)), jnp.zeros((1, D), jnp.float32),                # q_linear
        w(ks[2], (D, D)), jnp.zeros((1, D), jnp.float32),                # k_linear
        w(ks[3], (D, D)), jnp.zeros((1, D), jnp.float32),                # v_linear
        w(ks[4], (D, D)), jnp.zeros((1, D), jnp.float32),                # out
        jnp.ones((1, D), jnp.float32), jnp.zeros((1, D), jnp.float32),   # norm_2
        w(ks[5], (D, D_FF)), jnp.zeros((1, D_FF), jnp.float32),          # linear_1
        w(ks[6], (D_FF, D)), jnp.zeros((1, D), jnp.float32),             # linear_2
    )

    ref = reference(x, params, H)

    # 1) Strict semantics check: f32 matmul config, exact softmax reciprocal.
    prep_f32 = prepare_params(params, H, mm_dtype=jnp.float32)
    out_f32 = jax.block_until_ready(
        decoder_layer(x, prep_f32, H, q_tile=8, kv_tile=8, seq_tile=8,
                      approx_softmax_recip=False))
    assert out_f32.shape == (B, S, D)
    assert jnp.allclose(out_f32, ref, rtol=1e-4, atol=1e-4), "f32 config mismatch vs reference"

    # 2) Production config: bf16 MXU operands / f32 accumulation, EUP approx reciprocal.
    prep_bf16 = prepare_params(params, H, mm_dtype=jnp.bfloat16)
    out_bf16 = jax.block_until_ready(
        decoder_layer(x, prep_bf16, H, q_tile=8, kv_tile=8, seq_tile=8))
    assert out_bf16.shape == (B, S, D)
    assert jnp.allclose(out_bf16, ref, rtol=2e-2, atol=2e-2), "bf16 config mismatch vs reference"

    print("KERNEL_OK")
</pallas_src>

<mosaic_0001>
module attributes {stable_mosaic.version = 11 : i64} {
  func.func @_probe(%arg0: i32, %arg1: memref<8x128xf32, #tpu.memory_space<vmem>>, %arg2: memref<8x128xf32, #tpu.memory_space<vmem>>) attributes {dimension_semantics = [#tpu.dimension_semantics<arbitrary>], iteration_bounds = array<i64: 2>, scalar_prefetch = 0 : i64, scratch_operands = 0 : i64, tpu.core_type = #tpu.core_type<tc>, window_params = [{pipeline_mode = #tpu.pipeline_mode<synchronous>, transform_indices = @transform_0, window_bounds = array<i64: 8, 128>}, {pipeline_mode = #tpu.pipeline_mode<synchronous>, transform_indices = @transform_1, window_bounds = array<i64: 8, 128>}]} {
    %c0 = arith.constant 0 : index
    %c0_0 = arith.constant 0 : index
    %0 = vector.load %arg1[%c0, %c0_0] : memref<8x128xf32, #tpu.memory_space<vmem>>, vector<8x128xf32>
    %cst = arith.constant 2.000000e+00 : f32
    %1 = vector.broadcast %cst : f32 to vector<8x128xf32>
    %2 = arith.mulf %0, %1 : vector<8x128xf32>
    %c0_1 = arith.constant 0 : index
    %c0_2 = arith.constant 0 : index
    %3 = vector.load %arg2[%c0_1, %c0_2] : memref<8x128xf32, #tpu.memory_space<vmem>>, vector<8x128xf32>
    tpu.vector_store %arg2[%c0_1, %c0_2], %2 {strides = array<i32>} : memref<8x128xf32, #tpu.memory_space<vmem>>, vector<8x128xf32>,
    return
  }
  func.func @transform_0(%arg0: i32) -> (i32, i32) {
    %c0_i32 = arith.constant 0 : i32
    %c0_i32_0 = arith.constant 0 : i32
    %c0_i32_1 = arith.constant 0 : i32
    return %c0_i32, %c0_i32_0 : i32, i32
  }
  func.func @transform_1(%arg0: i32) -> (i32, i32) {
    %c0_i32 = arith.constant 0 : i32
    %c0_i32_0 = arith.constant 0 : i32
    %c0_i32_1 = arith.constant 0 : i32
    return %c0_i32, %c0_i32_0 : i32, i32
  }
}

module attributes {stable_mosaic.version = 11 : i64} {
  func.func @kernel(%arg0: i32, %arg1: i32, %arg2: memref<1x8x32xf32, #tpu.memory_space<vmem>>, %arg3: memref<1x32xf32, #tpu.memory_space<vmem>>, %arg4: memref<1x32xf32, #tpu.memory_space<vmem>>, %arg5: memref<32x32xf32, #tpu.memory_space<vmem>>, %arg6: memref<1x32xf32, #tpu.memory_space<vmem>>, %arg7: memref<32x32xf32, #tpu.memory_space<vmem>>, %arg8: memref<1x32xf32, #tpu.memory_space<vmem>>, %arg9: memref<32x32xf32, #tpu.memory_space<vmem>>, %arg10: memref<1x32xf32, #tpu.memory_space<vmem>>, %arg11: memref<1x4x8x8xf32, #tpu.memory_space<vmem>>, %arg12: memref<1x4x8x8xf32, #tpu.memory_space<vmem>>, %arg13: memref<1x4x8x8xf32, #tpu.memory_space<vmem>>) attributes {dimension_semantics = [#tpu.dimension_semantics<parallel>, #tpu.dimension_semantics<parallel>], iteration_bounds = array<i64: 2, 2>, scalar_prefetch = 0 : i64, scratch_operands = 0 : i64, tpu.core_type = #tpu.core_type<tc>, window_params = [{transform_indices = @transform_0, window_bounds = array<i64: 1, 8, 32>}, {pipeline_mode = #tpu.pipeline_mode<synchronous>, transform_indices = @transform_1, window_bounds = array<i64: 1, 32>}, {pipeline_mode = #tpu.pipeline_mode<synchronous>, transform_indices = @transform_2, window_bounds = array<i64: 1, 32>}, {pipeline_mode = #tpu.pipeline_mode<synchronous>, transform_indices = @transform_3, window_bounds = array<i64: 32, 32>}, {pipeline_mode = #tpu.pipeline_mode<synchronous>, transform_indices = @transform_4, window_bounds = array<i64: 1, 32>}, {pipeline_mode = #tpu.pipeline_mode<synchronous>, transform_indices = @transform_5, window_bounds = array<i64: 32, 32>}, {pipeline_mode = #tpu.pipeline_mode<synchronous>, transform_indices = @transform_6, window_bounds = array<i64: 1, 32>}, {pipeline_mode = #tpu.pipeline_mode<synchronous>, transform_indices = @transform_7, window_bounds = array<i64: 32, 32>}, {pipeline_mode = #tpu.pipeline_mode<synchronous>, transform_indices = @transform_8, window_bounds = array<i64: 1, 32>}, {transform_indices = @transform_9, window_bounds = array<i64: 1, 4, 8, 8>}, {transform_indices = @transform_10, window_bounds = array<i64: 1, 4, 8, 8>}, {transform_indices = @transform_11, window_bounds = array<i64: 1, 4, 8, 8>}]} {
    %c0 = arith.constant 0 : index
    %c0_0 = arith.constant 0 : index
    %c0_1 = arith.constant 0 : index
    %0 = vector.load %arg2[%c0, %c0_0, %c0_1] : memref<1x8x32xf32, #tpu.memory_space<vmem>>, vector<1x8x32xf32>
    %1 = vector.shape_cast %0 : vector<1x8x32xf32> to vector<8x32xf32>
    %c0_2 = arith.constant 0 : index
    %c0_3 = arith.constant 0 : index
    %2 = vector.load %arg3[%c0_2, %c0_3] : memref<1x32xf32, #tpu.memory_space<vmem>>, vector<1x32xf32>
    %c0_4 = arith.constant 0 : index
    %c0_5 = arith.constant 0 : index
    %3 = vector.load %arg4[%c0_4, %c0_5] : memref<1x32xf32, #tpu.memory_space<vmem>>, vector<1x32xf32>
    %cst = arith.constant dense<0.000000e+00> : vector<8xf32>
    %4 = vector.multi_reduction <add>, %1, %cst [1] : vector<8x32xf32> to vector<8xf32>
    %5 = vector.shape_cast %4 : vector<8xf32> to vector<8x1xf32>
    %cst_6 = arith.constant 3.200000e+01 : f32
    %6 = vector.broadcast %cst_6 : f32 to vector<8x1xf32>
    %7 = arith.divf %5, %6 : vector<8x1xf32>
    %8 = vector.broadcast %7 : vector<8x1xf32> to vector<8x32xf32>
    %9 = arith.subf %1, %8 : vector<8x32xf32>
    %10 = arith.mulf %9, %9 : vector<8x32xf32>
    %cst_7 = arith.constant dense<0.000000e+00> : vector<8xf32>
    %11 = vector.multi_reduction <add>, %10, %cst_7 [1] : vector<8x32xf32> to vector<8xf32>
    %12 = vector.shape_cast %11 : vector<8xf32> to vector<8x1xf32>
    %cst_8 = arith.constant 0.0322580636 : f32
    %13 = vector.broadcast %cst_8 : f32 to vector<8x1xf32>
    %14 = arith.mulf %12, %13 : vector<8x1xf32>
    %15 = math.sqrt %14 : vector<8x1xf32>
    %cst_9 = arith.constant 9.99999997E-7 : f32
    %16 = vector.broadcast %cst_9 : f32 to vector<8x1xf32>
    %17 = arith.addf %15, %16 : vector<8x1xf32>
    %18 = tpu.reciprocal %17 : vector<8x1xf32> -> vector<8x1xf32>
    %19 = vector.broadcast %18 : vector<8x1xf32> to vector<8x32xf32>
    %20 = arith.mulf %9, %19 : vector<8x32xf32>
    %21 = vector.broadcast %2 : vector<1x32xf32> to vector<8x32xf32>
    %22 = arith.mulf %21, %20 : vector<8x32xf32>
    %23 = vector.broadcast %3 : vector<1x32xf32> to vector<8x32xf32>
    %24 = arith.addf %22, %23 : vector<8x32xf32>
    %c0_10 = arith.constant 0 : index
    %c0_11 = arith.constant 0 : index
    %25 = vector.load %arg5[%c0_10, %c0_11] : memref<32x32xf32, #tpu.memory_space<vmem>>, vector<32x32xf32>
    %cst_12 = arith.constant dense<0.000000e+00> : vector<8x32xf32>
    %26 = tpu.matmul %24, %25, %cst_12 {dimension_numbers = #tpu.dot_dimension_numbers<[1], [0], [0], [1], [0, 0, 1, 1], [], []>} : vector<8x32xf32>, vector<32x32xf32>, vector<8x32xf32> -> vector<8x32xf32>
    %c0_13 = arith.constant 0 : index
    %c0_14 = arith.constant 0 : index
    %27 = vector.load %arg6[%c0_13, %c0_14] : memref<1x32xf32, #tpu.memory_space<vmem>>, vector<1x32xf32>
    %28 = vector.broadcast %27 : vector<1x32xf32> to vector<8x32xf32>
    %29 = arith.addf %26, %28 : vector<8x32xf32>
    %30 = vector.extract_strided_slice %29 {offsets = [0, 0], sizes = [8, 8], strides = [1, 1]} : vector<8x32xf32> to vector<8x8xf32>
    %c0_15 = arith.constant 0 : index
    %c0_16 = arith.constant 0 : index
    %c0_17 = arith.constant 0 : index
    %c0_18 = arith.constant 0 : index
    %31 = vector.load %arg11[%c0_15, %c0_16, %c0_17, %c0_18] : memref<1x4x8x8xf32, #tpu.memory_space<vmem>>, vector<1x1x8x8xf32>
    %32 = vector.shape_cast %31 : vector<1x1x8x8xf32> to vector<8x8xf32>
    %33 = vector.shape_cast %30 : vector<8x8xf32> to vector<1x1x8x8xf32>
    tpu.vector_store %arg11[%c0_15, %c0_16, %c0_17, %c0_18], %33 {strides = array<i32>} : memref<1x4x8x8xf32, #tpu.memory_space<vmem>>, vector<1x1x8x8xf32>,
    %34 = vector.extract_strided_slice %29 {offsets = [0, 8], sizes = [8, 8], strides = [1, 1]} : vector<8x32xf32> to vector<8x8xf32>
    %c0_19 = arith.constant 0 : index
    %c1 = arith.constant 1 : index
    %c0_20 = arith.constant 0 : index
    %c0_21 = arith.constant 0 : index
    %35 = vector.load %arg11[%c0_19, %c1, %c0_20, %c0_21] : memref<1x4x8x8xf32, #tpu.memory_space<vmem>>, vector<1x1x8x8xf32>
    %36 = vector.shape_cast %35 : vector<1x1x8x8xf32> to vector<8x8xf32>
    %37 = vector.shape_cast %34 : vector<8x8xf32> to vector<1x1x8x8xf32>
    tpu.vector_store %arg11[%c0_19, %c1, %c0_20, %c0_21], %37 {strides = array<i32>} : memref<1x4x8x8xf32, #tpu.memory_space<vmem>>, vector<1x1x8x8xf32>,
    %38 = vector.extract_strided_slice %29 {offsets = [0, 16], sizes = [8, 8], strides = [1, 1]} : vector<8x32xf32> to vector<8x8xf32>
    %c0_22 = arith.constant 0 : index
    %c2 = arith.constant 2 : index
    %c0_23 = arith.constant 0 : index
    %c0_24 = arith.constant 0 : index
    %39 = vector.load %arg11[%c0_22, %c2, %c0_23, %c0_24] : memref<1x4x8x8xf32, #tpu.memory_space<vmem>>, vector<1x1x8x8xf32>
    %40 = vector.shape_cast %39 : vector<1x1x8x8xf32> to vector<8x8xf32>
    %41 = vector.shape_cast %38 : vector<8x8xf32> to vector<1x1x8x8xf32>
    tpu.vector_store %arg11[%c0_22, %c2, %c0_23, %c0_24], %41 {strides = array<i32>} : memref<1x4x8x8xf32, #tpu.memory_space<vmem>>, vector<1x1x8x8xf32>,
    %42 = vector.extract_strided_slice %29 {offsets = [0, 24], sizes = [8, 8], strides = [1, 1]} : vector<8x32xf32> to vector<8x8xf32>
    %c0_25 = arith.constant 0 : index
    %c3 = arith.constant 3 : index
    %c0_26 = arith.constant 0 : index
    %c0_27 = arith.constant 0 : index
    %43 = vector.load %arg11[%c0_25, %c3, %c0_26, %c0_27] : memref<1x4x8x8xf32, #tpu.memory_space<vmem>>, vector<1x1x8x8xf32>
    %44 = vector.shape_cast %43 : vector<1x1x8x8xf32> to vector<8x8xf32>
    %45 = vector.shape_cast %42 : vector<8x8xf32> to vector<1x1x8x8xf32>
    tpu.vector_store %arg11[%c0_25, %c3, %c0_26, %c0_27], %45 {strides = array<i32>} : memref<1x4x8x8xf32, #tpu.memory_space<vmem>>, vector<1x1x8x8xf32>,
    %c0_28 = arith.constant 0 : index
    %c0_29 = arith.constant 0 : index
    %46 = vector.load %arg7[%c0_28, %c0_29] : memref<32x32xf32, #tpu.memory_space<vmem>>, vector<32x32xf32>
    %cst_30 = arith.constant dense<0.000000e+00> : vector<8x32xf32>
    %47 = tpu.matmul %24, %46, %cst_30 {dimension_numbers = #tpu.dot_dimension_numbers<[1], [0], [0], [1], [0, 0, 1, 1], [], []>} : vector<8x32xf32>, vector<32x32xf32>, vector<8x32xf32> -> vector<8x32xf32>
    %c0_31 = arith.constant 0 : index
    %c0_32 = arith.constant 0 : index
    %48 = vector.load %arg8[%c0_31, %c0_32] : memref<1x32xf32, #tpu.memory_space<vmem>>, vector<1x32xf32>
    %49 = vector.broadcast %48 : vector<1x32xf32> to vector<8x32xf32>
    %50 = arith.addf %47, %49 : vector<8x32xf32>
    %51 = vector.extract_strided_slice %50 {offsets = [0, 0], sizes = [8, 8], strides = [1, 1]} : vector<8x32xf32> to vector<8x8xf32>
    %c0_33 = arith.constant 0 : index
    %c0_34 = arith.constant 0 : index
    %c0_35 = arith.constant 0 : index
    %c0_36 = arith.constant 0 : index
    %52 = vector.load %arg12[%c0_33, %c0_34, %c0_35, %c0_36] : memref<1x4x8x8xf32, #tpu.memory_space<vmem>>, vector<1x1x8x8xf32>
    %53 = vector.shape_cast %52 : vector<1x1x8x8xf32> to vector<8x8xf32>
    %54 = vector.shape_cast %51 : vector<8x8xf32> to vector<1x1x8x8xf32>
    tpu.vector_store %arg12[%c0_33, %c0_34, %c0_35, %c0_36], %54 {strides = array<i32>} : memref<1x4x8x8xf32, #tpu.memory_space<vmem>>, vector<1x1x8x8xf32>,
    %55 = vector.extract_strided_slice %50 {offsets = [0, 8], sizes = [8, 8], strides = [1, 1]} : vector<8x32xf32> to vector<8x8xf32>
    %c0_37 = arith.constant 0 : index
    %c1_38 = arith.constant 1 : index
    %c0_39 = arith.constant 0 : index
    %c0_40 = arith.constant 0 : index
    %56 = vector.load %arg12[%c0_37, %c1_38, %c0_39, %c0_40] : memref<1x4x8x8xf32, #tpu.memory_space<vmem>>, vector<1x1x8x8xf32>
    %57 = vector.shape_cast %56 : vector<1x1x8x8xf32> to vector<8x8xf32>
    %58 = vector.shape_cast %55 : vector<8x8xf32> to vector<1x1x8x8xf32>
    tpu.vector_store %arg12[%c0_37, %c1_38, %c0_39, %c0_40], %58 {strides = array<i32>} : memref<1x4x8x8xf32, #tpu.memory_space<vmem>>, vector<1x1x8x8xf32>,
    %59 = vector.extract_strided_slice %50 {offsets = [0, 16], sizes = [8, 8], strides = [1, 1]} : vector<8x32xf32> to vector<8x8xf32>
    %c0_41 = arith.constant 0 : index
    %c2_42 = arith.constant 2 : index
    %c0_43 = arith.constant 0 : index
    %c0_44 = arith.constant 0 : index
    %60 = vector.load %arg12[%c0_41, %c2_42, %c0_43, %c0_44] : memref<1x4x8x8xf32, #tpu.memory_space<vmem>>, vector<1x1x8x8xf32>
    %61 = vector.shape_cast %60 : vector<1x1x8x8xf32> to vector<8x8xf32>
    %62 = vector.shape_cast %59 : vector<8x8xf32> to vector<1x1x8x8xf32>
    tpu.vector_store %arg12[%c0_41, %c2_42, %c0_43, %c0_44], %62 {strides = array<i32>} : memref<1x4x8x8xf32, #tpu.memory_space<vmem>>, vector<1x1x8x8xf32>,
    %63 = vector.extract_strided_slice %50 {offsets = [0, 24], sizes = [8, 8], strides = [1, 1]} : vector<8x32xf32> to vector<8x8xf32>
    %c0_45 = arith.constant 0 : index
    %c3_46 = arith.constant 3 : index
    %c0_47 = arith.constant 0 : index
    %c0_48 = arith.constant 0 : index
    %64 = vector.load %arg12[%c0_45, %c3_46, %c0_47, %c0_48] : memref<1x4x8x8xf32, #tpu.memory_space<vmem>>, vector<1x1x8x8xf32>
    %65 = vector.shape_cast %64 : vector<1x1x8x8xf32> to vector<8x8xf32>
    %66 = vector.shape_cast %63 : vector<8x8xf32> to vector<1x1x8x8xf32>
    tpu.vector_store %arg12[%c0_45, %c3_46, %c0_47, %c0_48], %66 {strides = array<i32>} : memref<1x4x8x8xf32, #tpu.memory_space<vmem>>, vector<1x1x8x8xf32>,
    %c0_49 = arith.constant 0 : index
    %c0_50 = arith.constant 0 : index
    %67 = vector.load %arg9[%c0_49, %c0_50] : memref<32x32xf32, #tpu.memory_space<vmem>>, vector<32x32xf32>
    %cst_51 = arith.constant dense<0.000000e+00> : vector<8x32xf32>
    %68 = tpu.matmul %24, %67, %cst_51 {dimension_numbers = #tpu.dot_dimension_numbers<[1], [0], [0], [1], [0, 0, 1, 1], [], []>} : vector<8x32xf32>, vector<32x32xf32>, vector<8x32xf32> -> vector<8x32xf32>
    %c0_52 = arith.constant 0 : index
    %c0_53 = arith.constant 0 : index
    %69 = vector.load %arg10[%c0_52, %c0_53] : memref<1x32xf32, #tpu.memory_space<vmem>>, vector<1x32xf32>
    %70 = vector.broadcast %69 : vector<1x32xf32> to vector<8x32xf32>
    %71 = arith.addf %68, %70 : vector<8x32xf32>
    %72 = vector.extract_strided_slice %71 {offsets = [0, 0], sizes = [8, 8], strides = [1, 1]} : vector<8x32xf32> to vector<8x8xf32>
    %c0_54 = arith.constant 0 : index
    %c0_55 = arith.constant 0 : index
    %c0_56 = arith.constant 0 : index
    %c0_57 = arith.constant 0 : index
    %73 = vector.load %arg13[%c0_54, %c0_55, %c0_56, %c0_57] : memref<1x4x8x8xf32, #tpu.memory_space<vmem>>, vector<1x1x8x8xf32>
    %74 = vector.shape_cast %73 : vector<1x1x8x8xf32> to vector<8x8xf32>
    %75 = vector.shape_cast %72 : vector<8x8xf32> to vector<1x1x8x8xf32>
    tpu.vector_store %arg13[%c0_54, %c0_55, %c0_56, %c0_57], %75 {strides = array<i32>} : memref<1x4x8x8xf32, #tpu.memory_space<vmem>>, vector<1x1x8x8xf32>,
    %76 = vector.extract_strided_slice %71 {offsets = [0, 8], sizes = [8, 8], strides = [1, 1]} : vector<8x32xf32> to vector<8x8xf32>
    %c0_58 = arith.constant 0 : index
    %c1_59 = arith.constant 1 : index
    %c0_60 = arith.constant 0 : index
    %c0_61 = arith.constant 0 : index
    %77 = vector.load %arg13[%c0_58, %c1_59, %c0_60, %c0_61] : memref<1x4x8x8xf32, #tpu.memory_space<vmem>>, vector<1x1x8x8xf32>
    %78 = vector.shape_cast %77 : vector<1x1x8x8xf32> to vector<8x8xf32>
    %79 = vector.shape_cast %76 : vector<8x8xf32> to vector<1x1x8x8xf32>
    tpu.vector_store %arg13[%c0_58, %c1_59, %c0_60, %c0_61], %79 {strides = array<i32>} : memref<1x4x8x8xf32, #tpu.memory_space<vmem>>, vector<1x1x8x8xf32>,
    %80 = vector.extract_strided_slice %71 {offsets = [0, 16], sizes = [8, 8], strides = [1, 1]} : vector<8x32xf32> to vector<8x8xf32>
    %c0_62 = arith.constant 0 : index
    %c2_63 = arith.constant 2 : index
    %c0_64 = arith.constant 0 : index
    %c0_65 = arith.constant 0 : index
    %81 = vector.load %arg13[%c0_62, %c2_63, %c0_64, %c0_65] : memref<1x4x8x8xf32, #tpu.memory_space<vmem>>, vector<1x1x8x8xf32>
    %82 = vector.shape_cast %81 : vector<1x1x8x8xf32> to vector<8x8xf32>
    %83 = vector.shape_cast %80 : vector<8x8xf32> to vector<1x1x8x8xf32>
    tpu.vector_store %arg13[%c0_62, %c2_63, %c0_64, %c0_65], %83 {strides = array<i32>} : memref<1x4x8x8xf32, #tpu.memory_space<vmem>>, vector<1x1x8x8xf32>,
    %84 = vector.extract_strided_slice %71 {offsets = [0, 24], sizes = [8, 8], strides = [1, 1]} : vector<8x32xf32> to vector<8x8xf32>
    %c0_66 = arith.constant 0 : index
    %c3_67 = arith.constant 3 : index
    %c0_68 = arith.constant 0 : index
    %c0_69 = arith.constant 0 : index
    %85 = vector.load %arg13[%c0_66, %c3_67, %c0_68, %c0_69] : memref<1x4x8x8xf32, #tpu.memory_space<vmem>>, vector<1x1x8x8xf32>
    %86 = vector.shape_cast %85 : vector<1x1x8x8xf32> to vector<8x8xf32>
    %87 = vector.shape_cast %84 : vector<8x8xf32> to vector<1x1x8x8xf32>
    tpu.vector_store %arg13[%c0_66, %c3_67, %c0_68, %c0_69], %87 {strides = array<i32>} : memref<1x4x8x8xf32, #tpu.memory_space<vmem>>, vector<1x1x8x8xf32>,
    return
  }
  func.func @transform_0(%arg0: i32, %arg1: i32) -> (i32, i32, i32) {
    %c0_i32 = arith.constant 0 : i32
    %c0_i32_0 = arith.constant 0 : i32
    return %arg0, %arg1, %c0_i32 : i32, i32, i32
  }
  func.func @transform_1(%arg0: i32, %arg1: i32) -> (i32, i32) {
    %c0_i32 = arith.constant 0 : i32
    %c0_i32_0 = arith.constant 0 : i32
    %c0_i32_1 = arith.constant 0 : i32
    return %c0_i32, %c0_i32_0 : i32, i32
  }
  func.func @transform_2(%arg0: i32, %arg1: i32) -> (i32, i32) {
    %c0_i32 = arith.constant 0 : i32
    %c0_i32_0 = arith.constant 0 : i32
    %c0_i32_1 = arith.constant 0 : i32
    return %c0_i32, %c0_i32_0 : i32, i32
  }
  func.func @transform_3(%arg0: i32, %arg1: i32) -> (i32, i32) {
    %c0_i32 = arith.constant 0 : i32
    %c0_i32_0 = arith.constant 0 : i32
    %c0_i32_1 = arith.constant 0 : i32
    return %c0_i32, %c0_i32_0 : i32, i32
  }
  func.func @transform_4(%arg0: i32, %arg1: i32) -> (i32, i32) {
    %c0_i32 = arith.constant 0 : i32
    %c0_i32_0 = arith.constant 0 : i32
    %c0_i32_1 = arith.constant 0 : i32
    return %c0_i32, %c0_i32_0 : i32, i32
  }
  func.func @transform_5(%arg0: i32, %arg1: i32) -> (i32, i32) {
    %c0_i32 = arith.constant 0 : i32
    %c0_i32_0 = arith.constant 0 : i32
    %c0_i32_1 = arith.constant 0 : i32
    return %c0_i32, %c0_i32_0 : i32, i32
  }
  func.func @transform_6(%arg0: i32, %arg1: i32) -> (i32, i32) {
    %c0_i32 = arith.constant 0 : i32
    %c0_i32_0 = arith.constant 0 : i32
    %c0_i32_1 = arith.constant 0 : i32
    return %c0_i32, %c0_i32_0 : i32, i32
  }
  func.func @transform_7(%arg0: i32, %arg1: i32) -> (i32, i32) {
    %c0_i32 = arith.constant 0 : i32
    %c0_i32_0 = arith.constant 0 : i32
    %c0_i32_1 = arith.constant 0 : i32
    return %c0_i32, %c0_i32_0 : i32, i32
  }
  func.func @transform_8(%arg0: i32, %arg1: i32) -> (i32, i32) {
    %c0_i32 = arith.constant 0 : i32
    %c0_i32_0 = arith.constant 0 : i32
    %c0_i32_1 = arith.constant 0 : i32
    return %c0_i32, %c0_i32_0 : i32, i32
  }
  func.func @transform_9(%arg0: i32, %arg1: i32) -> (i32, i32, i32, i32) {
    %c0_i32 = arith.constant 0 : i32
    %c0_i32_0 = arith.constant 0 : i32
    %c0_i32_1 = arith.constant 0 : i32
    return %arg0, %c0_i32, %arg1, %c0_i32_0 : i32, i32, i32, i32
  }
  func.func @transform_10(%arg0: i32, %arg1: i32) -> (i32, i32, i32, i32) {
    %c0_i32 = arith.constant 0 : i32
    %c0_i32_0 = arith.constant 0 : i32
    %c0_i32_1 = arith.constant 0 : i32
    return %arg0, %c0_i32, %arg1, %c0_i32_0 : i32, i32, i32, i32
  }
  func.func @transform_11(%arg0: i32, %arg1: i32) -> (i32, i32, i32, i32) {
    %c0_i32 = arith.constant 0 : i32
    %c0_i32_0 = arith.constant 0 : i32
    %c0_i32_1 = arith.constant 0 : i32
    return %arg0, %c0_i32, %arg1, %c0_i32_0 : i32, i32, i32, i32
  }
}

</mosaic_0001>

<llo_original>
// kernel: tpu_custom_call.1
$region0: #{tpu_custom_call.1}
  #allocation0 [shape = 'u32[]', space=smem, size = 0x4, offset = 0x4, fixed_abs, tag = 'smem constant byte address 0x4 - core index']
  #allocation1 [shape = 'u32[144,128]{1,0:T(1,128)}', space=vmem, size = 0x12000, scoped, tag = 'internal scratch']
  %s0 = inlined_call_operand.hbm [shape: f32[8,128], index: 0, kind: input, shape index: {}]
  %s1 = inlined_call_operand.hbm [shape: f32[8,128], index: 1, kind: output, shape index: {}]
  %s2 = sld [smem:[#allocation0]]
  $region41: #{tpu_custom_call.1} parent=0
    _
  %s4 = ssub.s32 1, %s2
  %s5 = scalar_select 0, %s4, %s2
  $region1: #{tpu_custom_call.1} parent=0
    #allocation2 [shape = 'u8[4096]{0}', space=vmem, size = 0x1000, scoped, tag = 'input window, operand 0, single buffered']
    #allocation3 [shape = 's32[2]{0}', space=sflag, size = 0x8, scoped, tag = 'scoped memory for tpu_custom_call.1']
    #allocation4 [shape = 's32[2]{0}', space=sflag, size = 0x8, scoped, tag = 'scoped memory for tpu_custom_call.1']
    #allocation5 [shape = 'u8[4096]{0}', space=vmem, size = 0x1000, scoped, tag = 'output window, operand 0, single buffered']
    %6 = vsyncpa [#allocation3], 0
    %7 = vsyncpa [#allocation4], 0
    loop: start=0, step=1, limit=4
    $region2: #{tpu_custom_call.1} parent=1 // loop_pre_header
      _
    $region3: #{tpu_custom_call.1} parent=1 // loop_header
      %s9 = sphi 0, %s13
      %p10 = scmp.ge.s32.totalorder %s9, 4
      %s17 = sphi 0, %s17
      %s19 = sphi 0, %s17
      %s20 = sphi 0, %s19
      %s34 = sphi 0, %s20
      %s38 = sphi 0, %s38
      %s40 = sphi 0, %s38
      %s41 = sphi 0, %s40
      %s55 = sphi 0, %s41
    $region4: #{tpu_custom_call.1} parent=1 // loop_header_branch
      %12 = sbr.rel (%p10) target = $region8
    $region5: #{tpu_custom_call.1} parent=1 // loop_body
      %s14 = ssub.s32 %s9, 1
      %s15 = ssub.s32 %s9, 2
      %s16 = sadd.s32 %s9, 1
      %s18 = sadd.s32 %s17, 1
      %p21 = scmp.eq.s32.totalorder %s9, 1
      %p22 = scmp.ne.s32.totalorder %s17, %s19
      %p23 = scmp.eq.s32.totalorder %s9, 0
      %p24 = por %p22, %p23
      %p25 = scmp.ne.s32.totalorder %s17, %s19
      %p26 = scmp.eq.s32.totalorder %s14, 1
      %p27 = por %p25, %p26
      %p28 = scmp.ne.s32.totalorder %s19, %s20
      %p29 = scmp.eq.s32.totalorder %s14, 0
      %p30 = por %p28, %p29
      %p31 = scmp.ne.s32.totalorder %s19, %s20
      %p32 = scmp.eq.s32.totalorder %s15, 1
      %p33 = por %p31, %p32
      %p35 = scmp.ne.s32.totalorder %s20, %s34
      %p36 = scmp.eq.s32.totalorder %s15, 0
      %p37 = por %p35, %p36
      %s39 = sadd.s32 %s38, 1
      %p42 = scmp.eq.s32.totalorder %s9, 1
      %p43 = scmp.ne.s32.totalorder %s38, %s40
      %p44 = scmp.eq.s32.totalorder %s9, 0
      %p45 = por %p43, %p44
      %p46 = scmp.ne.s32.totalorder %s38, %s40
      %p47 = scmp.eq.s32.totalorder %s14, 1
      %p48 = por %p46, %p47
      %p49 = scmp.ne.s32.totalorder %s40, %s41
      %p50 = scmp.eq.s32.totalorder %s14, 0
      %p51 = por %p49, %p50
      %p52 = scmp.ne.s32.totalorder %s40, %s41
      %p53 = scmp.eq.s32.totalorder %s15, 1
      %p54 = por %p52, %p53
      %p56 = scmp.ne.s32.totalorder %s41, %s55
      %p57 = scmp.eq.s32.totalorder %s15, 0
      %p58 = por %p56, %p57
      %p59 = scmp.le.s32.totalorder 1, %s9
      %p60 = scmp.lt.s32.totalorder %s9, 3
      %p61 = pnand %p59, %p60
      %p62 = pneg %p61
      // Predicated region
      $region9: #{tpu_custom_call.1} parent=5 // pred_check
        _
      $region10: #{tpu_custom_call.1} parent=5 // pred_check_branch
        %64 = sbr.rel (%p61) target = $region12
      $region11: #{tpu_custom_call.1} parent=5 // pred_region
        %s65 = ssub.s32 %s9, 1
        // Predicated region
        $region13: #{tpu_custom_call.1} parent=11 // pred_check
          %p66 = pneg %p30
        $region14: #{tpu_custom_call.1} parent=11 // pred_check_branch
          %68 = sbr.rel (%p66) target = $region16
        $region15: #{tpu_custom_call.1} parent=11 // pred_region
          %s70 = ssub.s32 128, 128
          %71 = vsyncadd [#allocation3], %s70
          %s73 = sshll.u32 [#allocation2], 4
          %s74 = int_to_ptr.vmem [resolvable:$true] %s73
          %76 = dma.hbm_to_vmem [thread:$0]  %s0, 128, %s74, [#allocation3]
        $region16: #{tpu_custom_call.1} parent=11 // pred_fallthru
          _
      $region12: #{tpu_custom_call.1} parent=5 // pred_fallthru
        _
      %p77 = scmp.lt.s32.totalorder %s9, 2
      // Predicated region
      $region17: #{tpu_custom_call.1} parent=5 // pred_check
        %p78 = pneg %p77
      $region18: #{tpu_custom_call.1} parent=5 // pred_check_branch
        %80 = sbr.rel (%p78) target = $region20
      $region19: #{tpu_custom_call.1} parent=5 // pred_region
        _
      $region20: #{tpu_custom_call.1} parent=5 // pred_fallthru
        _
      %p81 = scmp.le.s32.totalorder 1, %s9
      %p82 = scmp.lt.s32.totalorder %s9, 3
      %p83 = pnand %p81, %p82
      %p84 = pneg %p83
      // Predicated region
      $region21: #{tpu_custom_call.1} parent=5 // pred_check
        _
      $region22: #{tpu_custom_call.1} parent=5 // pred_check_branch
        %86 = sbr.rel (%p83) target = $region24
      $region23: #{tpu_custom_call.1} parent=5 // pred_region
        %s87 = ssub.s32 %s9, 1
        // Predicated region
        $region25: #{tpu_custom_call.1} parent=23 // pred_check
          %p88 = pneg %p30
        $region26: #{tpu_custom_call.1} parent=23 // pred_check_branch
          %90 = sbr.rel (%p88) target = $region28
        $region27: #{tpu_custom_call.1} parent=23 // pred_region
          %91 = dma.done [#allocation3], 128
        $region28: #{tpu_custom_call.1} parent=23 // pred_fallthru
          _
        %p92 = pneg %p30
        %p93 = pneg %p27
        %p94 = pneg %p51
        %p95 = pneg %p48
        %v96 = vld [vmem:[#allocation2] sm:$0xff]
        %v97 = vmul.f32 %v96, 2.0
        %98 = vst [vmem:[#allocation5] sm:$0xff] %v97
        // Predicated region
        $region29: #{tpu_custom_call.1} parent=23 // pred_check
          %p99 = pneg %p48
        $region30: #{tpu_custom_call.1} parent=23 // pred_check_branch
          %101 = sbr.rel (%p99) target = $region32
        $region31: #{tpu_custom_call.1} parent=23 // pred_region
          %s103 = ssub.s32 128, 128
          %104 = vsyncadd [#allocation4], %s103
          %s106 = sshll.u32 [#allocation5], 4
          %s107 = int_to_ptr.vmem [resolvable:$true] %s106
          %109 = dma.vmem_to_hbm [thread:$0]  %s107, 128, %s1, [#allocation4]
        $region32: #{tpu_custom_call.1} parent=23 // pred_fallthru
          _
        // Predicated region
        $region33: #{tpu_custom_call.1} parent=23 // pred_check
          %p110 = pneg %p48
        $region34: #{tpu_custom_call.1} parent=23 // pred_check_branch
          %112 = sbr.rel (%p110) target = $region36
        $region35: #{tpu_custom_call.1} parent=23 // pred_region
          %113 = dma.done [#allocation4], 128
        $region36: #{tpu_custom_call.1} parent=23 // pred_fallthru
          _
      $region24: #{tpu_custom_call.1} parent=5 // pred_fallthru
        _
      %p114 = scmp.le.s32.totalorder 2, %s9
      // Predicated region
      $region37: #{tpu_custom_call.1} parent=5 // pred_check
        %p115 = pneg %p114
      $region38: #{tpu_custom_call.1} parent=5 // pred_check_branch
        %117 = sbr.rel (%p115) target = $region40
      $region39: #{tpu_custom_call.1} parent=5 // pred_region
        %s118 = ssub.s32 %s9, 2
      $region40: #{tpu_custom_call.1} parent=5 // pred_fallthru
        _
    $region6: #{tpu_custom_call.1} parent=1 // loop_footer
      %s13 = sadd.s32 1, %s9
    $region7: #{tpu_custom_call.1} parent=1 // loop_footer_branch
      %8 = sbr.rel target = $region3
    $region8: #{tpu_custom_call.1} parent=1 // loop_exit
      _
    %119 = vsyncpa [#allocation3], 1
    %s120 = scalar_lea.sflag [#allocation3], 1
    %121 = vsyncpa %s120, 1
    %122 = vsyncpa [#allocation4], 1
    %s123 = scalar_lea.sflag [#allocation4], 1
    %124 = vsyncpa %s123, 1

// kernel: tpu_custom_call.1
$region0: #{tpu_custom_call.1}
  #allocation0 [shape = 'u32[]', space=smem, size = 0x4, offset = 0x4, fixed_abs, tag = 'smem constant byte address 0x4 - core index']
  #allocation1 [shape = 'u32[144,128]{1,0:T(1,128)}', space=vmem, size = 0x12000, scoped, tag = 'internal scratch']
  %s0 = inlined_call_operand.hbm [shape: f32[2,16,32], index: 0, kind: input, shape index: {}]
  %s1 = inlined_call_operand.hbm [shape: f32[1,32], index: 1, kind: input, shape index: {}]
  %s2 = inlined_call_operand.hbm [shape: f32[1,32], index: 2, kind: input, shape index: {}]
  %s3 = inlined_call_operand.hbm [shape: f32[32,32], index: 3, kind: input, shape index: {}]
  %s4 = inlined_call_operand.hbm [shape: f32[1,32], index: 4, kind: input, shape index: {}]
  %s5 = inlined_call_operand.hbm [shape: f32[32,32], index: 5, kind: input, shape index: {}]
  %s6 = inlined_call_operand.hbm [shape: f32[1,32], index: 6, kind: input, shape index: {}]
  %s7 = inlined_call_operand.hbm [shape: f32[32,32], index: 7, kind: input, shape index: {}]
  %s8 = inlined_call_operand.hbm [shape: f32[1,32], index: 8, kind: input, shape index: {}]
  %s9 = inlined_call_operand.hbm [shape: f32[2,4,16,8], index: 9, kind: output, shape index: {0}]
  %s10 = inlined_call_operand.hbm [shape: f32[2,4,16,8], index: 10, kind: output, shape index: {1}]
  %s11 = inlined_call_operand.hbm [shape: f32[2,4,16,8], index: 11, kind: output, shape index: {2}]
  %12 = xla_tuple %s9, %s10, %s11
  %s13 = sld [smem:[#allocation0]]
  $region121: #{tpu_custom_call.1} parent=0
    _
  %s15 = ssub.s32 1, %s13
  %s16 = scalar_select 0, %s15, %s13
  $region1: #{tpu_custom_call.1} parent=0
    #allocation2 [shape = 'u8[8192]{0}', space=vmem, size = 0x2000, scoped, tag = 'input window, operand 0']
    #allocation3 [shape = 's32[2]{0}', space=sflag, size = 0x8, scoped, tag = 'scoped memory for tpu_custom_call.1']
    #allocation4 [shape = 's32[2]{0}', space=sflag, size = 0x8, scoped, tag = 'scoped memory for tpu_custom_call.1']
    #allocation5 [shape = 'u8[512]{0}', space=vmem, size = 0x400, scoped, tag = 'input window, operand 1, single buffered']
    #allocation6 [shape = 's32[1]{0}', space=sflag, size = 0x4, scoped, tag = 'scoped memory for tpu_custom_call.1']
    #allocation7 [shape = 'u8[512]{0}', space=vmem, size = 0x400, scoped, tag = 'input window, operand 2, single buffered']
    #allocation8 [shape = 'u8[16384]{0}', space=vmem, size = 0x4000, scoped, tag = 'input window, operand 3, single buffered']
    #allocation9 [shape = 's32[1]{0}', space=sflag, size = 0x4, scoped, tag = 'scoped memory for tpu_custom_call.1']
    #allocation10 [shape = 'u8[512]{0}', space=vmem, size = 0x400, scoped, tag = 'input window, operand 4, single buffered']
    #allocation11 [shape = 'u8[16384]{0}', space=vmem, size = 0x4000, scoped, tag = 'input window, operand 5, single buffered']
    #allocation12 [shape = 's32[1]{0}', space=sflag, size = 0x4, scoped, tag = 'scoped memory for tpu_custom_call.1']
    #allocation13 [shape = 'u8[512]{0}', space=vmem, size = 0x400, scoped, tag = 'input window, operand 6, single buffered']
    #allocation14 [shape = 'u8[16384]{0}', space=vmem, size = 0x4000, scoped, tag = 'input window, operand 7, single buffered']
    #allocation15 [shape = 's32[1]{0}', space=sflag, size = 0x4, scoped, tag = 'scoped memory for tpu_custom_call.1']
    #allocation16 [shape = 'u8[512]{0}', space=vmem, size = 0x400, scoped, tag = 'input window, operand 8, single buffered']
    #allocation17 [shape = 'u8[32768]{0}', space=vmem, size = 0x8000, scoped, tag = 'output window, operand 0']
    #allocation18 [shape = 'u8[32768]{0}', space=vmem, size = 0x8000, scoped, tag = 'output window, operand 1']
    #allocation19 [shape = 's32[2]{0}', space=sflag, size = 0x8, scoped, tag = 'scoped memory for tpu_custom_call.1']
    #allocation20 [shape = 'u8[32768]{0}', space=vmem, size = 0x8000, scoped, tag = 'output window, operand 2']
    %17 = vsyncpa [#allocation3], 0
    %s18 = scalar_lea.sflag [#allocation3], 1
    %19 = vsyncpa %s18, 0
    %20 = vsyncpa [#allocation6], 0
    %21 = vsyncpa [#allocation9], 0
    %22 = vsyncpa [#allocation12], 0
    %23 = vsyncpa [#allocation15], 0
    %24 = vsyncpa [#allocation4], 0
    %s25 = scalar_lea.sflag [#allocation4], 1
    %26 = vsyncpa %s25, 0
    %27 = vsyncpa [#allocation19], 0
    %s28 = scalar_lea.sflag [#allocation19], 1
    %29 = vsyncpa %s28, 0
    loop: start=0, step=1, limit=6
    $region2: #{tpu_custom_call.1} parent=1 // loop_pre_header
      _
    $region3: #{tpu_custom_call.1} parent=1 // loop_header
      %s31 = sphi 0, %s35
      %p32 = scmp.ge.s32.totalorder %s31, 6
      %s38 = sphi 0, %s50
      %s39 = sphi 0, %s46
      %s40 = sphi 0, %s38
      %s41 = sphi 0, %s39
      %s42 = sphi 0, %s40
      %s43 = sphi 0, %s41
      %s55 = sphi 0, %s57
      %s58 = sphi 0, %s55
      %s59 = sphi 0, %s58
      %s75 = sphi 0, %s59
      %s79 = sphi 0, %s79
      %s81 = sphi 0, %s79
      %s82 = sphi 0, %s81
      %s96 = sphi 0, %s82
      %s100 = sphi 0, %s100
      %s102 = sphi 0, %s100
      %s103 = sphi 0, %s102
      %s117 = sphi 0, %s103
      %s121 = sphi 0, %s121
      %s123 = sphi 0, %s121
      %s124 = sphi 0, %s123
      %s138 = sphi 0, %s124
      %s142 = sphi 0, %s142
      %s144 = sphi 0, %s142
      %s145 = sphi 0, %s144
      %s159 = sphi 0, %s145
      %s163 = sphi 0, %s163
      %s165 = sphi 0, %s163
      %s166 = sphi 0, %s165
      %s180 = sphi 0, %s166
      %s184 = sphi 0, %s184
      %s186 = sphi 0, %s184
      %s187 = sphi 0, %s186
      %s201 = sphi 0, %s187
      %s205 = sphi 0, %s205
      %s207 = sphi 0, %s205
      %s208 = sphi 0, %s207
      %s222 = sphi 0, %s208
      %s226 = sphi 0, %s226
      %s228 = sphi 0, %s226
      %s229 = sphi 0, %s228
      %s243 = sphi 0, %s229
      %s251 = sphi 0, %s253
      %s254 = sphi 0, %s251
      %s255 = sphi 0, %s254
      %s271 = sphi 0, %s255
      %s279 = sphi 0, %s281
      %s282 = sphi 0, %s279
      %s283 = sphi 0, %s282
      %s299 = sphi 0, %s283
      %s307 = sphi 0, %s309
      %s310 = sphi 0, %s307
      %s311 = sphi 0, %s310
      %s327 = sphi 0, %s311
    $region4: #{tpu_custom_call.1} parent=1 // loop_header_branch
      %34 = sbr.rel (%p32) target = $region8
    $region5: #{tpu_custom_call.1} parent=1 // loop_body
      %s36 = ssub.s32 %s31, 1
      %s37 = ssub.s32 %s31, 2
      %s44 = sadd.s32 1, %s39
      %p45 = scmp.ge.s32.totalorder %s44, 2
      %s46 = scalar_select %p45, 0, %s44
      %s47 = sadd.s32 1, %s38
      %s48 = scalar_select %p45, %s47, %s38
      %p49 = scmp.ge.s32.totalorder %s48, 2
      %s50 = scalar_select %p49, 0, %s48
      %s51 = ssub.s32 %s38, %s50
      %s52 = ssub.s32 %s39, %s46
      %s53 = sor.u32 %s51, %s52
      %p54 = scmp.eq.s32.totalorder %s53, 0
      %s56 = sadd.s32 %s55, 1
      %s57 = scalar_select %p54, %s55, %s56
      %p60 = pneg %p54
      %p61 = scmp.eq.s32.totalorder %s31, 3
      %p62 = por %p60, %p61
      %p63 = scmp.ne.s32.totalorder %s55, %s58
      %p64 = scmp.eq.s32.totalorder %s31, 0
      %p65 = por %p63, %p64
      %p66 = scmp.ne.s32.totalorder %s55, %s58
      %p67 = scmp.eq.s32.totalorder %s36, 3
      %p68 = por %p66, %p67
      %p69 = scmp.ne.s32.totalorder %s58, %s59
      %p70 = scmp.eq.s32.totalorder %s36, 0
      %p71 = por %p69, %p70
      %p72 = scmp.ne.s32.totalorder %s58, %s59
      %p73 = scmp.eq.s32.totalorder %s37, 3
      %p74 = por %p72, %p73
      %p76 = scmp.ne.s32.totalorder %s59, %s75
      %p77 = scmp.eq.s32.totalorder %s37, 0
      %p78 = por %p76, %p77
      %s80 = sadd.s32 %s79, 1
      %p83 = scmp.eq.s32.totalorder %s31, 3
      %p84 = scmp.ne.s32.totalorder %s79, %s81
      %p85 = scmp.eq.s32.totalorder %s31, 0
      %p86 = por %p84, %p85
      %p87 = scmp.ne.s32.totalorder %s79, %s81
      %p88 = scmp.eq.s32.totalorder %s36, 3
      %p89 = por %p87, %p88
      %p90 = scmp.ne.s32.totalorder %s81, %s82
      %p91 = scmp.eq.s32.totalorder %s36, 0
      %p92 = por %p90, %p91
      %p93 = scmp.ne.s32.totalorder %s81, %s82
      %p94 = scmp.eq.s32.totalorder %s37, 3
      %p95 = por %p93, %p94
      %p97 = scmp.ne.s32.totalorder %s82, %s96
      %p98 = scmp.eq.s32.totalorder %s37, 0
      %p99 = por %p97, %p98
      %s101 = sadd.s32 %s100, 1
      %p104 = scmp.eq.s32.totalorder %s31, 3
      %p105 = scmp.ne.s32.totalorder %s100, %s102
      %p106 = scmp.eq.s32.totalorder %s31, 0
      %p107 = por %p105, %p106
      %p108 = scmp.ne.s32.totalorder %s100, %s102
      %p109 = scmp.eq.s32.totalorder %s36, 3
      %p110 = por %p108, %p109
      %p111 = scmp.ne.s32.totalorder %s102, %s103
      %p112 = scmp.eq.s32.totalorder %s36, 0
      %p113 = por %p111, %p112
      %p114 = scmp.ne.s32.totalorder %s102, %s103
      %p115 = scmp.eq.s32.totalorder %s37, 3
      %p116 = por %p114, %p115
      %p118 = scmp.ne.s32.totalorder %s103, %s117
      %p119 = scmp.eq.s32.totalorder %s37, 0
      %p120 = por %p118, %p119
      %s122 = sadd.s32 %s121, 1
      %p125 = scmp.eq.s32.totalorder %s31, 3
      %p126 = scmp.ne.s32.totalorder %s121, %s123
      %p127 = scmp.eq.s32.totalorder %s31, 0
      %p128 = por %p126, %p127
      %p129 = scmp.ne.s32.totalorder %s121, %s123
      %p130 = scmp.eq.s32.totalorder %s36, 3
      %p131 = por %p129, %p130
      %p132 = scmp.ne.s32.totalorder %s123, %s124
      %p133 = scmp.eq.s32.totalorder %s36, 0
      %p134 = por %p132, %p133
      %p135 = scmp.ne.s32.totalorder %s123, %s124
      %p136 = scmp.eq.s32.totalorder %s37, 3
      %p137 = por %p135, %p136
      %p139 = scmp.ne.s32.totalorder %s124, %s138
      %p140 = scmp.eq.s32.totalorder %s37, 0
      %p141 = por %p139, %p140
      %s143 = sadd.s32 %s142, 1
      %p146 = scmp.eq.s32.totalorder %s31, 3
      %p147 = scmp.ne.s32.totalorder %s142, %s144
      %p148 = scmp.eq.s32.totalorder %s31, 0
      %p149 = por %p147, %p148
      %p150 = scmp.ne.s32.totalorder %s142, %s144
      %p151 = scmp.eq.s32.totalorder %s36, 3
      %p152 = por %p150, %p151
      %p153 = scmp.ne.s32.totalorder %s144, %s145
      %p154 = scmp.eq.s32.totalorder %s36, 0
      %p155 = por %p153, %p154
      %p156 = scmp.ne.s32.totalorder %s144, %s145
      %p157 = scmp.eq.s32.totalorder %s37, 3
      %p158 = por %p156, %p157
      %p160 = scmp.ne.s32.totalorder %s145, %s159
      %p161 = scmp.eq.s32.totalorder %s37, 0
      %p162 = por %p160, %p161
      %s164 = sadd.s32 %s163, 1
      %p167 = scmp.eq.s32.totalorder %s31, 3
      %p168 = scmp.ne.s32.totalorder %s163, %s165
      %p169 = scmp.eq.s32.totalorder %s31, 0
      %p170 = por %p168, %p169
      %p171 = scmp.ne.s32.totalorder %s163, %s165
      %p172 = scmp.eq.s32.totalorder %s36, 3
      %p173 = por %p171, %p172
      %p174 = scmp.ne.s32.totalorder %s165, %s166
      %p175 = scmp.eq.s32.totalorder %s36, 0
      %p176 = por %p174, %p175
      %p177 = scmp.ne.s32.totalorder %s165, %s166
      %p178 = scmp.eq.s32.totalorder %s37, 3
      %p179 = por %p177, %p178
      %p181 = scmp.ne.s32.totalorder %s166, %s180
      %p182 = scmp.eq.s32.totalorder %s37, 0
      %p183 = por %p181, %p182
      %s185 = sadd.s32 %s184, 1
      %p188 = scmp.eq.s32.totalorder %s31, 3
      %p189 = scmp.ne.s32.totalorder %s184, %s186
      %p190 = scmp.eq.s32.totalorder %s31, 0
      %p191 = por %p189, %p190
      %p192 = scmp.ne.s32.totalorder %s184, %s186
      %p193 = scmp.eq.s32.totalorder %s36, 3
      %p194 = por %p192, %p193
      %p195 = scmp.ne.s32.totalorder %s186, %s187
      %p196 = scmp.eq.s32.totalorder %s36, 0
      %p197 = por %p195, %p196
      %p198 = scmp.ne.s32.totalorder %s186, %s187
      %p199 = scmp.eq.s32.totalorder %s37, 3
      %p200 = por %p198, %p199
      %p202 = scmp.ne.s32.totalorder %s187, %s201
      %p203 = scmp.eq.s32.totalorder %s37, 0
      %p204 = por %p202, %p203
      %s206 = sadd.s32 %s205, 1
      %p209 = scmp.eq.s32.totalorder %s31, 3
      %p210 = scmp.ne.s32.totalorder %s205, %s207
      %p211 = scmp.eq.s32.totalorder %s31, 0
      %p212 = por %p210, %p211
      %p213 = scmp.ne.s32.totalorder %s205, %s207
      %p214 = scmp.eq.s32.totalorder %s36, 3
      %p215 = por %p213, %p214
      %p216 = scmp.ne.s32.totalorder %s207, %s208
      %p217 = scmp.eq.s32.totalorder %s36, 0
      %p218 = por %p216, %p217
      %p219 = scmp.ne.s32.totalorder %s207, %s208
      %p220 = scmp.eq.s32.totalorder %s37, 3
      %p221 = por %p219, %p220
      %p223 = scmp.ne.s32.totalorder %s208, %s222
      %p224 = scmp.eq.s32.totalorder %s37, 0
      %p225 = por %p223, %p224
      %s227 = sadd.s32 %s226, 1
      %p230 = scmp.eq.s32.totalorder %s31, 3
      %p231 = scmp.ne.s32.totalorder %s226, %s228
      %p232 = scmp.eq.s32.totalorder %s31, 0
      %p233 = por %p231, %p232
      %p234 = scmp.ne.s32.totalorder %s226, %s228
      %p235 = scmp.eq.s32.totalorder %s36, 3
      %p236 = por %p234, %p235
      %p237 = scmp.ne.s32.totalorder %s228, %s229
      %p238 = scmp.eq.s32.totalorder %s36, 0
      %p239 = por %p237, %p238
      %p240 = scmp.ne.s32.totalorder %s228, %s229
      %p241 = scmp.eq.s32.totalorder %s37, 3
      %p242 = por %p240, %p241
      %p244 = scmp.ne.s32.totalorder %s229, %s243
      %p245 = scmp.eq.s32.totalorder %s37, 0
      %p246 = por %p244, %p245
      %s247 = ssub.s32 %s38, %s50
      %s248 = ssub.s32 %s39, %s46
      %s249 = sor.u32 %s247, %s248
      %p250 = scmp.eq.s32.totalorder %s249, 0
      %s252 = sadd.s32 %s251, 1
      %s253 = scalar_select %p250, %s251, %s252
      %p256 = pneg %p250
      %p257 = scmp.eq.s32.totalorder %s31, 3
      %p258 = por %p256, %p257
      %p259 = scmp.ne.s32.totalorder %s251, %s254
      %p260 = scmp.eq.s32.totalorder %s31, 0
      %p261 = por %p259, %p260
      %p262 = scmp.ne.s32.totalorder %s251, %s254
      %p263 = scmp.eq.s32.totalorder %s36, 3
      %p264 = por %p262, %p263
      %p265 = scmp.ne.s32.totalorder %s254, %s255
      %p266 = scmp.eq.s32.totalorder %s36, 0
      %p267 = por %p265, %p266
      %p268 = scmp.ne.s32.totalorder %s254, %s255
      %p269 = scmp.eq.s32.totalorder %s37, 3
      %p270 = por %p268, %p269
      %p272 = scmp.ne.s32.totalorder %s255, %s271
      %p273 = scmp.eq.s32.totalorder %s37, 0
      %p274 = por %p272, %p273
      %s275 = ssub.s32 %s38, %s50
      %s276 = ssub.s32 %s39, %s46
      %s277 = sor.u32 %s275, %s276
      %p278 = scmp.eq.s32.totalorder %s277, 0
      %s280 = sadd.s32 %s279, 1
      %s281 = scalar_select %p278, %s279, %s280
      %p284 = pneg %p278
      %p285 = scmp.eq.s32.totalorder %s31, 3
      %p286 = por %p284, %p285
      %p287 = scmp.ne.s32.totalorder %s279, %s282
      %p288 = scmp.eq.s32.totalorder %s31, 0
      %p289 = por %p287, %p288
      %p290 = scmp.ne.s32.totalorder %s279, %s282
      %p291 = scmp.eq.s32.totalorder %s36, 3
      %p292 = por %p290, %p291
      %p293 = scmp.ne.s32.totalorder %s282, %s283
      %p294 = scmp.eq.s32.totalorder %s36, 0
      %p295 = por %p293, %p294
      %p296 = scmp.ne.s32.totalorder %s282, %s283
      %p297 = scmp.eq.s32.totalorder %s37, 3
      %p298 = por %p296, %p297
      %p300 = scmp.ne.s32.totalorder %s283, %s299
      %p301 = scmp.eq.s32.totalorder %s37, 0
      %p302 = por %p300, %p301
      %s303 = ssub.s32 %s38, %s50
      %s304 = ssub.s32 %s39, %s46
      %s305 = sor.u32 %s303, %s304
      %p306 = scmp.eq.s32.totalorder %s305, 0
      %s308 = sadd.s32 %s307, 1
      %s309 = scalar_select %p306, %s307, %s308
      %p312 = pneg %p306
      %p313 = scmp.eq.s32.totalorder %s31, 3
      %p314 = por %p312, %p313
      %p315 = scmp.ne.s32.totalorder %s307, %s310
      %p316 = scmp.eq.s32.totalorder %s31, 0
      %p317 = por %p315, %p316
      %p318 = scmp.ne.s32.totalorder %s307, %s310
      %p319 = scmp.eq.s32.totalorder %s36, 3
      %p320 = por %p318, %p319
      %p321 = scmp.ne.s32.totalorder %s310, %s311
      %p322 = scmp.eq.s32.totalorder %s36, 0
      %p323 = por %p321, %p322
      %p324 = scmp.ne.s32.totalorder %s310, %s311
      %p325 = scmp.eq.s32.totalorder %s37, 3
      %p326 = por %p324, %p325
      %p328 = scmp.ne.s32.totalorder %s311, %s327
      %p329 = scmp.eq.s32.totalorder %s37, 0
      %p330 = por %p328, %p329
      %p331 = scmp.le.s32.totalorder 1, %s31
      %p332 = scmp.lt.s32.totalorder %s31, 5
      %p333 = pnand %p331, %p332
      %p334 = pneg %p333
      // Predicated region
      $region9: #{tpu_custom_call.1} parent=5 // pred_check
        _
      $region10: #{tpu_custom_call.1} parent=5 // pred_check_branch
        %336 = sbr.rel (%p333) target = $region12
      $region11: #{tpu_custom_call.1} parent=5 // pred_region
        %s337 = ssub.s32 %s31, 1
        // Predicated region
        $region13: #{tpu_custom_call.1} parent=11 // pred_check
          %p338 = pneg %p92
        $region14: #{tpu_custom_call.1} parent=11 // pred_check_branch
          %340 = sbr.rel (%p338) target = $region16
        $region15: #{tpu_custom_call.1} parent=11 // pred_region
          %s342 = ssub.s32 16, 16
          %343 = vsyncadd [#allocation6], %s342
          %s345 = sshll.u32 [#allocation5], 4
          %s346 = int_to_ptr.vmem [resolvable:$true] %s345
          %348 = dma.hbm_to_vmem [thread:$0]  %s1, 16, %s346, [#allocation6]
        $region16: #{tpu_custom_call.1} parent=11 // pred_fallthru
          _
        // Predicated region
        $region17: #{tpu_custom_call.1} parent=11 // pred_check
          %p349 = pneg %p113
        $region18: #{tpu_custom_call.1} parent=11 // pred_check_branch
          %351 = sbr.rel (%p349) target = $region20
        $region19: #{tpu_custom_call.1} parent=11 // pred_region
          %s353 = ssub.s32 16, 16
          %354 = vsyncadd [#allocation6], %s353
          %s356 = sshll.u32 [#allocation7], 4
          %s357 = int_to_ptr.vmem [resolvable:$true] %s356
          %359 = dma.hbm_to_vmem [thread:$0]  %s2, 16, %s357, [#allocation6]
        $region20: #{tpu_custom_call.1} parent=11 // pred_fallthru
          _
        // Predicated region
        $region21: #{tpu_custom_call.1} parent=11 // pred_check
          %p360 = pneg %p134
        $region22: #{tpu_custom_call.1} parent=11 // pred_check_branch
          %362 = sbr.rel (%p360) target = $region24
        $region23: #{tpu_custom_call.1} parent=11 // pred_region
          %s364 = ssub.s32 512, 512
          %365 = vsyncadd [#allocation9], %s364
          %s366 = sshll.u32 [#allocation8], 4
          %s367 = int_to_ptr.vmem [resolvable:$true] %s366
          %372 = dma.hbm_to_vmem [thread:$0]  %s3, 512, %s367, [#allocation9], 128, 128, 8
        $region24: #{tpu_custom_call.1} parent=11 // pred_fallthru
          _
        // Predicated region
        $region25: #{tpu_custom_call.1} parent=11 // pred_check
          %p373 = pneg %p155
        $region26: #{tpu_custom_call.1} parent=11 // pred_check_branch
          %375 = sbr.rel (%p373) target = $region28
        $region27: #{tpu_custom_call.1} parent=11 // pred_region
          %s377 = ssub.s32 16, 16
          %378 = vsyncadd [#allocation9], %s377
          %s380 = sshll.u32 [#allocation10], 4
          %s381 = int_to_ptr.vmem [resolvable:$true] %s380
          %383 = dma.hbm_to_vmem [thread:$0]  %s4, 16, %s381, [#allocation9]
        $region28: #{tpu_custom_call.1} parent=11 // pred_fallthru
          _
        // Predicated region
        $region29: #{tpu_custom_call.1} parent=11 // pred_check
          %p384 = pneg %p176
        $region30: #{tpu_custom_call.1} parent=11 // pred_check_branch
          %386 = sbr.rel (%p384) target = $region32
        $region31: #{tpu_custom_call.1} parent=11 // pred_region
          %s388 = ssub.s32 512, 512
          %389 = vsyncadd [#allocation12], %s388
          %s390 = sshll.u32 [#allocation11], 4
          %s391 = int_to_ptr.vmem [resolvable:$true] %s390
          %396 = dma.hbm_to_vmem [thread:$0]  %s5, 512, %s391, [#allocation12], 128, 128, 8
        $region32: #{tpu_custom_call.1} parent=11 // pred_fallthru
          _
        // Predicated region
        $region33: #{tpu_custom_call.1} parent=11 // pred_check
          %p397 = pneg %p197
        $region34: #{tpu_custom_call.1} parent=11 // pred_check_branch
          %399 = sbr.rel (%p397) target = $region36
        $region35: #{tpu_custom_call.1} parent=11 // pred_region
          %s401 = ssub.s32 16, 16
          %402 = vsyncadd [#allocation12], %s401
          %s404 = sshll.u32 [#allocation13], 4
          %s405 = int_to_ptr.vmem [resolvable:$true] %s404
          %407 = dma.hbm_to_vmem [thread:$0]  %s6, 16, %s405, [#allocation12]
        $region36: #{tpu_custom_call.1} parent=11 // pred_fallthru
          _
        // Predicated region
        $region37: #{tpu_custom_call.1} parent=11 // pred_check
          %p408 = pneg %p218
        $region38: #{tpu_custom_call.1} parent=11 // pred_check_branch
          %410 = sbr.rel (%p408) target = $region40
        $region39: #{tpu_custom_call.1} parent=11 // pred_region
          %s412 = ssub.s32 512, 512
          %413 = vsyncadd [#allocation15], %s412
          %s414 = sshll.u32 [#allocation14], 4
          %s415 = int_to_ptr.vmem [resolvable:$true] %s414
          %420 = dma.hbm_to_vmem [thread:$0]  %s7, 512, %s415, [#allocation15], 128, 128, 8
        $region40: #{tpu_custom_call.1} parent=11 // pred_fallthru
          _
        // Predicated region
        $region41: #{tpu_custom_call.1} parent=11 // pred_check
          %p421 = pneg %p239
        $region42: #{tpu_custom_call.1} parent=11 // pred_check_branch
          %423 = sbr.rel (%p421) target = $region44
        $region43: #{tpu_custom_call.1} parent=11 // pred_region
          %s425 = ssub.s32 16, 16
          %426 = vsyncadd [#allocation15], %s425
          %s428 = sshll.u32 [#allocation16], 4
          %s429 = int_to_ptr.vmem [resolvable:$true] %s428
          %431 = dma.hbm_to_vmem [thread:$0]  %s8, 16, %s429, [#allocation15]
        $region44: #{tpu_custom_call.1} parent=11 // pred_fallthru
          _
      $region12: #{tpu_custom_call.1} parent=5 // pred_fallthru
        _
      %p432 = scmp.lt.s32.totalorder %s31, 4
      // Predicated region
      $region45: #{tpu_custom_call.1} parent=5 // pred_check
        %p433 = pneg %p432
      $region46: #{tpu_custom_call.1} parent=5 // pred_check_branch
        %435 = sbr.rel (%p433) target = $region48
      $region47: #{tpu_custom_call.1} parent=5 // pred_region
        // Predicated region
        $region49: #{tpu_custom_call.1} parent=47 // pred_check
          %p436 = pneg %p65
        $region50: #{tpu_custom_call.1} parent=47 // pred_check_branch
          %438 = sbr.rel (%p436) target = $region52
        $region51: #{tpu_custom_call.1} parent=47 // pred_region
          %s439 = sand.u32 %s55, 1
          %s440 = scalar_lea.sflag [#allocation3], %s439
          %s441 = sand.u32 %s55, 1
          %s442 = smul.addr %s441, 8
          %s443 = scalar_lea.vmem [#allocation2], %s442
          %s445 = ssub.s32 128, 128
          %446 = vsyncadd %s440, %s445
          %s447 = smul.addr %s38, 2
          %s448 = sadd.s32 %s39, %s447
          %s449 = smul.addr %s448, 128
          %s450 = scalar_lea.hbm %s0, %s449
          %s452 = sshll.u32 %s443, 4
          %s453 = int_to_ptr.vmem [resolvable:$true] %s452
          %455 = dma.hbm_to_vmem [thread:$0]  %s450, 128, %s453, %s440
        $region52: #{tpu_custom_call.1} parent=47 // pred_fallthru
          _
      $region48: #{tpu_custom_call.1} parent=5 // pred_fallthru
        _
      %p456 = scmp.le.s32.totalorder 1, %s31
      %p457 = scmp.lt.s32.totalorder %s31, 5
      %p458 = pnand %p456, %p457
      %p459 = pneg %p458
      // Predicated region
      $region53: #{tpu_custom_call.1} parent=5 // pred_check
        _
      $region54: #{tpu_custom_call.1} parent=5 // pred_check_branch
        %461 = sbr.rel (%p458) target = $region56
      $region55: #{tpu_custom_call.1} parent=5 // pred_region
        %s462 = ssub.s32 %s31, 1
        %s463 = sand.u32 %s58, 1
        %s464 = scalar_lea.sflag [#allocation3], %s463
        %s465 = sand.u32 %s58, 1
        %s466 = smul.addr %s465, 8
        %s467 = scalar_lea.vmem [#allocation2], %s466
        // Predicated region
        $region57: #{tpu_custom_call.1} parent=55 // pred_check
          %p468 = pneg %p71
        $region58: #{tpu_custom_call.1} parent=55 // pred_check_branch
          %470 = sbr.rel (%p468) target = $region60
        $region59: #{tpu_custom_call.1} parent=55 // pred_region
          %471 = dma.done %s464, 128
        $region60: #{tpu_custom_call.1} parent=55 // pred_fallthru
          _
        // Predicated region
        $region61: #{tpu_custom_call.1} parent=55 // pred_check
          %p472 = pneg %p92
        $region62: #{tpu_custom_call.1} parent=55 // pred_check_branch
          %474 = sbr.rel (%p472) target = $region64
        $region63: #{tpu_custom_call.1} parent=55 // pred_region
          %475 = dma.done [#allocation6], 16
        $region64: #{tpu_custom_call.1} parent=55 // pred_fallthru
          _
        // Predicated region
        $region65: #{tpu_custom_call.1} parent=55 // pred_check
          %p476 = pneg %p113
        $region66: #{tpu_custom_call.1} parent=55 // pred_check_branch
          %478 = sbr.rel (%p476) target = $region68
        $region67: #{tpu_custom_call.1} parent=55 // pred_region
          %479 = dma.done [#allocation6], 16
        $region68: #{tpu_custom_call.1} parent=55 // pred_fallthru
          _
        // Predicated region
        $region69: #{tpu_custom_call.1} parent=55 // pred_check
          %p480 = pneg %p134
        $region70: #{tpu_custom_call.1} parent=55 // pred_check_branch
          %482 = sbr.rel (%p480) target = $region72
        $region71: #{tpu_custom_call.1} parent=55 // pred_region
          %483 = dma.done [#allocation9], 512
        $region72: #{tpu_custom_call.1} parent=55 // pred_fallthru
          _
        // Predicated region
        $region73: #{tpu_custom_call.1} parent=55 // pred_check
          %p484 = pneg %p155
        $region74: #{tpu_custom_call.1} parent=55 // pred_check_branch
          %486 = sbr.rel (%p484) target = $region76
        $region75: #{tpu_custom_call.1} parent=55 // pred_region
          %487 = dma.done [#allocation9], 16
        $region76: #{tpu_custom_call.1} parent=55 // pred_fallthru
          _
        // Predicated region
        $region77: #{tpu_custom_call.1} parent=55 // pred_check
          %p488 = pneg %p176
        $region78: #{tpu_custom_call.1} parent=55 // pred_check_branch
          %490 = sbr.rel (%p488) target = $region80
        $region79: #{tpu_custom_call.1} parent=55 // pred_region
          %491 = dma.done [#allocation12], 512
        $region80: #{tpu_custom_call.1} parent=55 // pred_fallthru
          _
        // Predicated region
        $region81: #{tpu_custom_call.1} parent=55 // pred_check
          %p492 = pneg %p197
        $region82: #{tpu_custom_call.1} parent=55 // pred_check_branch
          %494 = sbr.rel (%p492) target = $region84
        $region83: #{tpu_custom_call.1} parent=55 // pred_region
          %495 = dma.done [#allocation12], 16
        $region84: #{tpu_custom_call.1} parent=55 // pred_fallthru
          _
        // Predicated region
        $region85: #{tpu_custom_call.1} parent=55 // pred_check
          %p496 = pneg %p218
        $region86: #{tpu_custom_call.1} parent=55 // pred_check_branch
          %498 = sbr.rel (%p496) target = $region88
        $region87: #{tpu_custom_call.1} parent=55 // pred_region
          %499 = dma.done [#allocation15], 512
        $region88: #{tpu_custom_call.1} parent=55 // pred_fallthru
          _
        // Predicated region
        $region89: #{tpu_custom_call.1} parent=55 // pred_check
          %p500 = pneg %p239
        $region90: #{tpu_custom_call.1} parent=55 // pred_check_branch
          %502 = sbr.rel (%p500) target = $region92
        $region91: #{tpu_custom_call.1} parent=55 // pred_region
          %503 = dma.done [#allocation15], 16
        $region92: #{tpu_custom_call.1} parent=55 // pred_fallthru
          _
        %s504 = sand.u32 %s58, 1
        %s505 = scalar_lea.sflag [#allocation3], %s504
        %s506 = sand.u32 %s58, 1
        %s507 = smul.addr %s506, 8
        %s508 = scalar_lea.vmem [#allocation2], %s507
        %p509 = pneg %p71
        %p510 = pneg %p68
        %p511 = pneg %p92
        %p512 = pneg %p89
        %p513 = pneg %p113
        %p514 = pneg %p110
        %p515 = pneg %p134
        %p516 = pneg %p131
        %p517 = pneg %p155
        %p518 = pneg %p152
        %p519 = pneg %p176
        %p520 = pneg %p173
        %p521 = pneg %p197
        %p522 = pneg %p194
        %p523 = pneg %p218
        %p524 = pneg %p215
        %p525 = pneg %p239
        %p526 = pneg %p236
        %p527 = pneg %p267
        %p528 = pneg %p264
        %s529 = sand.u32 %s254, 1
        %s530 = scalar_lea.sflag [#allocation4], %s529
        %s531 = sand.u32 %s254, 1
        %s532 = smul.addr %s531, 32
        %s533 = scalar_lea.vmem [#allocation17], %s532
        %p534 = pneg %p295
        %p535 = pneg %p292
        %s536 = sand.u32 %s36, 1
        %s537 = scalar_lea.sflag [#allocation19], %s536
        %s538 = sand.u32 %s282, 1
        %s539 = smul.addr %s538, 32
        %s540 = scalar_lea.vmem [#allocation18], %s539
        %p541 = pneg %p323
        %p542 = pneg %p320
        %s543 = sand.u32 %s36, 1
        %s544 = scalar_lea.sflag [#allocation19], %s543
        %s545 = sand.u32 %s310, 1
        %s546 = smul.addr %s545, 32
        %s547 = scalar_lea.vmem [#allocation20], %s546
        %v548 = vld [vmem:[%s467] sm:$0xff]
        %v549 = vld [vmem:[#allocation5] sm:$0x1]
        %v550 = vld [vmem:[#allocation7] sm:$0x1]
        %vm551 = vcmask 261120
        %v552 = vsel %vm551, %v548, 0.0
        %553 = vadd.xlane.f32.xlu0 %v552
        %v554 = vpop.xlane.xlu0 %553
        %v555 = vrcp.pop 32.0
        %v556 = vmul.f32 %v554, %v555
        %v557 = vsub.f32 %v548, %v556
        %v558 = vmul.f32 %v557, %v557
        %v559 = vsel %vm551, %v558, 0.0
        %560 = vadd.xlane.f32.xlu0 %v559
        %v561 = vpop.xlane.xlu0 %560
        %v562 = vmul.f32 %v561, 0.032258064
        %v563 = vrsqrt.pop %v562
        %v564 = vmul.f32 %v562, %v563
        %vm565 = vcmp.eq.f32.partialorder %v562, inf
        %v566 = vsel %vm565, %v562, %v564
        %vm567 = vcmp.eq.f32.partialorder %v562, 0.0
        %v568 = vand.u32 %v562, 2147483648
        %v569 = vsel %vm567, %v568, %v566
        %v570 = vadd.f32 %v569, 1e-06
        %v571 = vrcp.pop %v570
        %v572 = vmul.f32 %v557, %v571
        %v574 = vlaneseq
        %v575 = vshrl.u32 %v574, 7
        %v576 = vsub.s32 0, %v575
        %v577 = vrot.slane %v549, %v576
        %v579 = vmul.f32 %v577, %v572
        %v581 = vlaneseq
        %v582 = vshrl.u32 %v581, 7
        %v583 = vsub.s32 0, %v582
        %v584 = vrot.slane %v550, %v583
        %v586 = vadd.f32 %v579, %v584
        %v587 = vld [vmem:[#allocation8] sm:$0xff]
        %v588 = vld [vmem:[#allocation8 + $0x8] sm:$0xff]
        %v589 = vld [vmem:[#allocation8 + $0x10] sm:$0xff]
        %v590 = vld [vmem:[#allocation8 + $0x18] sm:$0xff]
        %v591 = vld [vmem:[#allocation10] sm:$0x1]
        %v593 = vlaneseq
        %v594 = vshrl.u32 %v593, 7
        %v595 = vsub.s32 0, %v594
        %v596 = vrot.slane %v591, %v595
        %v599 = vsel %vm551, %v586, 0
        %601 = vmatprep.subr.mxu0 0.0
        %602 = vmatpush1.msra.mxu0 %v587
        %603 = vmatprep.subr.mxu0 0.0
        %604 = vmatpush1.msra.mxu0 %v588
        %605 = vmatprep.subr.mxu0 0.0
        %606 = vmatpush1.msra.mxu0 %v589
        %607 = vmatprep.subr.mxu0 0.0
        %608 = vmatpush1.msra.mxu0 %v590
        %609 = vmatprep.subr.mxu0 0.0
        %610 = vmatpush1.msra.mxu0 0.0
        %611 = vmatprep.subr.mxu0 0.0
        %612 = vmatpush1.msra.mxu0 0.0
        %613 = vmatprep.subr.mxu0 0.0
        %614 = vmatpush1.msra.mxu0 0.0
        %615 = vmatprep.subr.mxu0 0.0
        %616 = vmatpush1.msra.mxu0 0.0
        %617 = vmatprep.subr.mxu0 0.0
        %618 = vmatpush1.msra.mxu0 0.0
        %619 = vmatprep.subr.mxu0 0.0
        %620 = vmatpush1.msra.mxu0 0.0
        %621 = vmatprep.subr.mxu0 0.0
        %622 = vmatpush1.msra.mxu0 0.0
        %623 = vmatprep.subr.mxu0 0.0
        %624 = vmatpush1.msra.mxu0 0.0
        %625 = vmatprep.subr.mxu0 0.0
        %626 = vmatpush1.msra.mxu0 0.0
        %627 = vmatprep.subr.mxu0 0.0
        %628 = vmatpush1.msra.mxu0 0.0
        %629 = vmatprep.subr.mxu0 0.0
        %630 = vmatpush1.msra.mxu0 0.0
        %631 = vmatprep.subr.mxu0 0.0
        %632 = vmatpush1.msra.mxu0 0.0
        %633 = vmatprep.subr.mxu0 0.0
        %634 = vmatpush1.msra.mxu0 0.0
        %635 = vmatprep.subr.mxu0 0.0
        %636 = vmatpush1.msra.mxu0 0.0
        %637 = vmatprep.subr.mxu0 0.0
        %638 = vmatpush1.msra.mxu0 0.0
        %639 = vmatprep.subr.mxu0 0.0
        %640 = vmatpush1.msra.mxu0 0.0
        %641 = vmatprep.subr.mxu0 0.0
        %642 = vmatpush1.msra.mxu0 0.0
        %643 = vmatprep.subr.mxu0 0.0
        %644 = vmatpush1.msra.mxu0 0.0
        %645 = vmatprep.subr.mxu0 0.0
        %646 = vmatpush1.msra.mxu0 0.0
        %647 = vmatprep.subr.mxu0 0.0
        %648 = vmatpush1.msra.mxu0 0.0
        %649 = vmatprep.subr.mxu0 0.0
        %650 = vmatpush1.msra.mxu0 0.0
        %651 = vmatprep.subr.mxu0 0.0
        %652 = vmatpush1.msra.mxu0 0.0
        %653 = vmatprep.subr.mxu0 0.0
        %654 = vmatpush1.msra.mxu0 0.0
        %655 = vmatprep.subr.mxu0 0.0
        %656 = vmatpush1.msra.mxu0 0.0
        %657 = vmatprep.subr.mxu0 0.0
        %658 = vmatpush1.msra.mxu0 0.0
        %659 = vmatprep.subr.mxu0 0.0
        %660 = vmatpush1.msra.mxu0 0.0
        %661 = vmatprep.subr.mxu0 0.0
        %662 = vmatpush1.msra.mxu0 0.0
        %663 = vmatprep.subr.mxu0 0.0
        %664 = vmatpush1.msra.mxu0 0.0
        %665 = vmatprep.mubr.f32.mxu0 0.0
        %666 = vmatmul.mubr.f32.gmra.mrb[0].mxu0 %v599
        %v667 = vpop.f32.mrb[0].mxu0
        %v668 = vadd.f32 %v596, %v667
        %v669 = vpop.f32.mrb[0].mxu0
        %670 = vdwg.mxu0
        %vm671 = vcmask 64512
        %672 = vst.msk [vmem:[%s533] sm:$0xff] %vm671, %v668
        %674 = vrot.lane.b32.xlu0 %v668, 120
        %v675 = vpop.permute.xlu0 %674
        %s677 = scalar_lea.vmem %s533, 8 [#allocation17]
        %678 = vst.msk [vmem:[%s677] sm:$0xff] %vm671, %v675
        %679 = vrot.lane.b32.xlu0 %v668, 112
        %v680 = vpop.permute.xlu0 %679
        %s682 = scalar_lea.vmem %s533, 16 [#allocation17]
        %683 = vst.msk [vmem:[%s682] sm:$0xff] %vm671, %v680
        %684 = vrot.lane.b32.xlu0 %v668, 104
        %v685 = vpop.permute.xlu0 %684
        %s687 = scalar_lea.vmem %s533, 24 [#allocation17]
        %688 = vst.msk [vmem:[%s687] sm:$0xff] %vm671, %v685
        %v689 = vld [vmem:[#allocation11] sm:$0xff]
        %v690 = vld [vmem:[#allocation11 + $0x8] sm:$0xff]
        %v691 = vld [vmem:[#allocation11 + $0x10] sm:$0xff]
        %v692 = vld [vmem:[#allocation11 + $0x18] sm:$0xff]
        %v693 = vld [vmem:[#allocation13] sm:$0x1]
        %v695 = vlaneseq
        %v696 = vshrl.u32 %v695, 7
        %v697 = vsub.s32 0, %v696
        %v698 = vrot.slane %v693, %v697
        %700 = vmatprep.subr.mxu0 0.0
        %701 = vmatpush1.msra.mxu0 %v689
        %702 = vmatprep.subr.mxu0 0.0
        %703 = vmatpush1.msra.mxu0 %v690
        %704 = vmatprep.subr.mxu0 0.0
        %705 = vmatpush1.msra.mxu0 %v691
        %706 = vmatprep.subr.mxu0 0.0
        %707 = vmatpush1.msra.mxu0 %v692
        %708 = vmatprep.subr.mxu0 0.0
        %709 = vmatpush1.msra.mxu0 0.0
        %710 = vmatprep.subr.mxu0 0.0
        %711 = vmatpush1.msra.mxu0 0.0
        %712 = vmatprep.subr.mxu0 0.0
        %713 = vmatpush1.msra.mxu0 0.0
        %714 = vmatprep.subr.mxu0 0.0
        %715 = vmatpush1.msra.mxu0 0.0
        %716 = vmatprep.subr.mxu0 0.0
        %717 = vmatpush1.msra.mxu0 0.0
        %718 = vmatprep.subr.mxu0 0.0
        %719 = vmatpush1.msra.mxu0 0.0
        %720 = vmatprep.subr.mxu0 0.0
        %721 = vmatpush1.msra.mxu0 0.0
        %722 = vmatprep.subr.mxu0 0.0
        %723 = vmatpush1.msra.mxu0 0.0
        %724 = vmatprep.subr.mxu0 0.0
        %725 = vmatpush1.msra.mxu0 0.0
        %726 = vmatprep.subr.mxu0 0.0
        %727 = vmatpush1.msra.mxu0 0.0
        %728 = vmatprep.subr.mxu0 0.0
        %729 = vmatpush1.msra.mxu0 0.0
        %730 = vmatprep.subr.mxu0 0.0
        %731 = vmatpush1.msra.mxu0 0.0
        %732 = vmatprep.subr.mxu0 0.0
        %733 = vmatpush1.msra.mxu0 0.0
        %734 = vmatprep.subr.mxu0 0.0
        %735 = vmatpush1.msra.mxu0 0.0
        %736 = vmatprep.subr.mxu0 0.0
        %737 = vmatpush1.msra.mxu0 0.0
        %738 = vmatprep.subr.mxu0 0.0
        %739 = vmatpush1.msra.mxu0 0.0
        %740 = vmatprep.subr.mxu0 0.0
        %741 = vmatpush1.msra.mxu0 0.0
        %742 = vmatprep.subr.mxu0 0.0
        %743 = vmatpush1.msra.mxu0 0.0
        %744 = vmatprep.subr.mxu0 0.0
        %745 = vmatpush1.msra.mxu0 0.0
        %746 = vmatprep.subr.mxu0 0.0
        %747 = vmatpush1.msra.mxu0 0.0
        %748 = vmatprep.subr.mxu0 0.0
        %749 = vmatpush1.msra.mxu0 0.0
        %750 = vmatprep.subr.mxu0 0.0
        %751 = vmatpush1.msra.mxu0 0.0
        %752 = vmatprep.subr.mxu0 0.0
        %753 = vmatpush1.msra.mxu0 0.0
        %754 = vmatprep.subr.mxu0 0.0
        %755 = vmatpush1.msra.mxu0 0.0
        %756 = vmatprep.subr.mxu0 0.0
        %757 = vmatpush1.msra.mxu0 0.0
        %758 = vmatprep.subr.mxu0 0.0
        %759 = vmatpush1.msra.mxu0 0.0
        %760 = vmatprep.subr.mxu0 0.0
        %761 = vmatpush1.msra.mxu0 0.0
        %762 = vmatprep.subr.mxu0 0.0
        %763 = vmatpush1.msra.mxu0 0.0
        %764 = vmatprep.mubr.f32.mxu0 0.0
        %765 = vmatmul.mubr.f32.gmra.mrb[0].mxu0 %v599
        %v766 = vpop.f32.mrb[0].mxu0
        %v767 = vadd.f32 %v698, %v766
        %v768 = vpop.f32.mrb[0].mxu0
        %769 = vdwg.mxu0
        %770 = vst.msk [vmem:[%s540] sm:$0xff] %vm671, %v767
        %772 = vrot.lane.b32.xlu0 %v767, 120
        %v773 = vpop.permute.xlu0 %772
        %s775 = scalar_lea.vmem %s540, 8 [#allocation18]
        %776 = vst.msk [vmem:[%s775] sm:$0xff] %vm671, %v773
        %777 = vrot.lane.b32.xlu0 %v767, 112
        %v778 = vpop.permute.xlu0 %777
        %s780 = scalar_lea.vmem %s540, 16 [#allocation18]
        %781 = vst.msk [vmem:[%s780] sm:$0xff] %vm671, %v778
        %782 = vrot.lane.b32.xlu0 %v767, 104
        %v783 = vpop.permute.xlu0 %782
        %s785 = scalar_lea.vmem %s540, 24 [#allocation18]
        %786 = vst.msk [vmem:[%s785] sm:$0xff] %vm671, %v783
        %v787 = vld [vmem:[#allocation14] sm:$0xff]
        %v788 = vld [vmem:[#allocation14 + $0x8] sm:$0xff]
        %v789 = vld [vmem:[#allocation14 + $0x10] sm:$0xff]
        %v790 = vld [vmem:[#allocation14 + $0x18] sm:$0xff]
        %v791 = vld [vmem:[#allocation16] sm:$0x1]
        %v793 = vlaneseq
        %v794 = vshrl.u32 %v793, 7
        %v795 = vsub.s32 0, %v794
        %v796 = vrot.slane %v791, %v795
        %798 = vmatprep.subr.mxu0 0.0
        %799 = vmatpush1.msra.mxu0 %v787
        %800 = vmatprep.subr.mxu0 0.0
        %801 = vmatpush1.msra.mxu0 %v788
        %802 = vmatprep.subr.mxu0 0.0
        %803 = vmatpush1.msra.mxu0 %v789
        %804 = vmatprep.subr.mxu0 0.0
        %805 = vmatpush1.msra.mxu0 %v790
        %806 = vmatprep.subr.mxu0 0.0
        %807 = vmatpush1.msra.mxu0 0.0
        %808 = vmatprep.subr.mxu0 0.0
        %809 = vmatpush1.msra.mxu0 0.0
        %810 = vmatprep.subr.mxu0 0.0
        %811 = vmatpush1.msra.mxu0 0.0
        %812 = vmatprep.subr.mxu0 0.0
        %813 = vmatpush1.msra.mxu0 0.0
        %814 = vmatprep.subr.mxu0 0.0
        %815 = vmatpush1.msra.mxu0 0.0
        %816 = vmatprep.subr.mxu0 0.0
        %817 = vmatpush1.msra.mxu0 0.0
        %818 = vmatprep.subr.mxu0 0.0
        %819 = vmatpush1.msra.mxu0 0.0
        %820 = vmatprep.subr.mxu0 0.0
        %821 = vmatpush1.msra.mxu0 0.0
        %822 = vmatprep.subr.mxu0 0.0
        %823 = vmatpush1.msra.mxu0 0.0
        %824 = vmatprep.subr.mxu0 0.0
        %825 = vmatpush1.msra.mxu0 0.0
        %826 = vmatprep.subr.mxu0 0.0
        %827 = vmatpush1.msra.mxu0 0.0
        %828 = vmatprep.subr.mxu0 0.0
        %829 = vmatpush1.msra.mxu0 0.0
        %830 = vmatprep.subr.mxu0 0.0
        %831 = vmatpush1.msra.mxu0 0.0
        %832 = vmatprep.subr.mxu0 0.0
        %833 = vmatpush1.msra.mxu0 0.0
        %834 = vmatprep.subr.mxu0 0.0
        %835 = vmatpush1.msra.mxu0 0.0
        %836 = vmatprep.subr.mxu0 0.0
        %837 = vmatpush1.msra.mxu0 0.0
        %838 = vmatprep.subr.mxu0 0.0
        %839 = vmatpush1.msra.mxu0 0.0
        %840 = vmatprep.subr.mxu0 0.0
        %841 = vmatpush1.msra.mxu0 0.0
        %842 = vmatprep.subr.mxu0 0.0
        %843 = vmatpush1.msra.mxu0 0.0
        %844 = vmatprep.subr.mxu0 0.0
        %845 = vmatpush1.msra.mxu0 0.0
        %846 = vmatprep.subr.mxu0 0.0
        %847 = vmatpush1.msra.mxu0 0.0
        %848 = vmatprep.subr.mxu0 0.0
        %849 = vmatpush1.msra.mxu0 0.0
        %850 = vmatprep.subr.mxu0 0.0
        %851 = vmatpush1.msra.mxu0 0.0
        %852 = vmatprep.subr.mxu0 0.0
        %853 = vmatpush1.msra.mxu0 0.0
        %854 = vmatprep.subr.mxu0 0.0
        %855 = vmatpush1.msra.mxu0 0.0
        %856 = vmatprep.subr.mxu0 0.0
        %857 = vmatpush1.msra.mxu0 0.0
        %858 = vmatprep.subr.mxu0 0.0
        %859 = vmatpush1.msra.mxu0 0.0
        %860 = vmatprep.subr.mxu0 0.0
        %861 = vmatpush1.msra.mxu0 0.0
        %862 = vmatprep.mubr.f32.mxu0 0.0
        %863 = vmatmul.mubr.f32.gmra.mrb[0].mxu0 %v599
        %v864 = vpop.f32.mrb[0].mxu0
        %v865 = vadd.f32 %v796, %v864
        %v866 = vpop.f32.mrb[0].mxu0
        %867 = vdwg.mxu0
        %868 = vst.msk [vmem:[%s547] sm:$0xff] %vm671, %v865
        %870 = vrot.lane.b32.xlu0 %v865, 120
        %v871 = vpop.permute.xlu0 %870
        %s873 = scalar_lea.vmem %s547, 8 [#allocation20]
        %874 = vst.msk [vmem:[%s873] sm:$0xff] %vm671, %v871
        %875 = vrot.lane.b32.xlu0 %v865, 112
        %v876 = vpop.permute.xlu0 %875
        %s878 = scalar_lea.vmem %s547, 16 [#allocation20]
        %879 = vst.msk [vmem:[%s878] sm:$0xff] %vm671, %v876
        %880 = vrot.lane.b32.xlu0 %v865, 104
        %v881 = vpop.permute.xlu0 %880
        %s883 = scalar_lea.vmem %s547, 24 [#allocation20]
        %884 = vst.msk [vmem:[%s883] sm:$0xff] %vm671, %v881
        %s885 = sand.u32 %s254, 1
        %s886 = scalar_lea.sflag [#allocation4], %s885
        %s887 = sand.u32 %s254, 1
        %s888 = smul.addr %s887, 32
        %s889 = scalar_lea.vmem [#allocation17], %s888
        %s890 = sand.u32 %s36, 1
        %s891 = scalar_lea.sflag [#allocation19], %s890
        %s892 = sand.u32 %s282, 1
        %s893 = smul.addr %s892, 32
        %s894 = scalar_lea.vmem [#allocation18], %s893
        %s895 = sand.u32 %s36, 1
        %s896 = scalar_lea.sflag [#allocation19], %s895
        %s897 = sand.u32 %s310, 1
        %s898 = smul.addr %s897, 32
        %s899 = scalar_lea.vmem [#allocation20], %s898
        // Predicated region
        $region93: #{tpu_custom_call.1} parent=55 // pred_check
          %p900 = pneg %p264
        $region94: #{tpu_custom_call.1} parent=55 // pred_check_branch
          %902 = sbr.rel (%p900) target = $region96
        $region95: #{tpu_custom_call.1} parent=55 // pred_region
          %s904 = ssub.s32 512, 512
          %905 = vsyncadd %s886, %s904
          %s906 = smul.addr %s40, 8
          %s907 = sadd.s32 %s41, %s906
          %s908 = smul.addr %s907, 128
          %s909 = scalar_lea.hbm %s9, %s908
          %s910 = sshll.u32 %s889, 4
          %s911 = int_to_ptr.vmem [resolvable:$true] %s910
          %916 = dma.vmem_to_hbm [thread:$0]  %s911, 512, %s909, %s886, 128, 256, 8
        $region96: #{tpu_custom_call.1} parent=55 // pred_fallthru
          _
        // Predicated region
        $region97: #{tpu_custom_call.1} parent=55 // pred_check
          %p917 = pneg %p292
        $region98: #{tpu_custom_call.1} parent=55 // pred_check_branch
          %919 = sbr.rel (%p917) target = $region100
        $region99: #{tpu_custom_call.1} parent=55 // pred_region
          %s921 = ssub.s32 512, 512
          %922 = vsyncadd %s891, %s921
          %s923 = smul.addr %s40, 8
          %s924 = sadd.s32 %s41, %s923
          %s925 = smul.addr %s924, 128
          %s926 = scalar_lea.hbm %s10, %s925
          %s927 = sshll.u32 %s894, 4
          %s928 = int_to_ptr.vmem [resolvable:$true] %s927
          %933 = dma.vmem_to_hbm [thread:$0]  %s928, 512, %s926, %s891, 128, 256, 8
        $region100: #{tpu_custom_call.1} parent=55 // pred_fallthru
          _
        // Predicated region
        $region101: #{tpu_custom_call.1} parent=55 // pred_check
          %p934 = pneg %p320
        $region102: #{tpu_custom_call.1} parent=55 // pred_check_branch
          %936 = sbr.rel (%p934) target = $region104
        $region103: #{tpu_custom_call.1} parent=55 // pred_region
          %s938 = ssub.s32 512, 512
          %939 = vsyncadd %s896, %s938
          %s940 = smul.addr %s40, 8
          %s941 = sadd.s32 %s41, %s940
          %s942 = smul.addr %s941, 128
          %s943 = scalar_lea.hbm %s11, %s942
          %s944 = sshll.u32 %s899, 4
          %s945 = int_to_ptr.vmem [resolvable:$true] %s944
          %950 = dma.vmem_to_hbm [thread:$0]  %s945, 512, %s943, %s896, 128, 256, 8
        $region104: #{tpu_custom_call.1} parent=55 // pred_fallthru
          _
      $region56: #{tpu_custom_call.1} parent=5 // pred_fallthru
        _
      %p951 = scmp.le.s32.totalorder 2, %s31
      // Predicated region
      $region105: #{tpu_custom_call.1} parent=5 // pred_check
        %p952 = pneg %p951
      $region106: #{tpu_custom_call.1} parent=5 // pred_check_branch
        %954 = sbr.rel (%p952) target = $region108
      $region107: #{tpu_custom_call.1} parent=5 // pred_region
        %s955 = ssub.s32 %s31, 2
        // Predicated region
        $region109: #{tpu_custom_call.1} parent=107 // pred_check
          %p956 = pneg %p270
        $region110: #{tpu_custom_call.1} parent=107 // pred_check_branch
          %958 = sbr.rel (%p956) target = $region112
        $region111: #{tpu_custom_call.1} parent=107 // pred_region
          %s959 = sand.u32 %s255, 1
          %s960 = scalar_lea.sflag [#allocation4], %s959
          %s961 = sand.u32 %s255, 1
          %s962 = smul.addr %s961, 32
          %s963 = scalar_lea.vmem [#allocation17], %s962
          %964 = dma.done %s960, 512
        $region112: #{tpu_custom_call.1} parent=107 // pred_fallthru
          _
        // Predicated region
        $region113: #{tpu_custom_call.1} parent=107 // pred_check
          %p965 = pneg %p298
        $region114: #{tpu_custom_call.1} parent=107 // pred_check_branch
          %967 = sbr.rel (%p965) target = $region116
        $region115: #{tpu_custom_call.1} parent=107 // pred_region
          %s968 = sand.u32 %s37, 1
          %s969 = scalar_lea.sflag [#allocation19], %s968
          %s970 = sand.u32 %s283, 1
          %s971 = smul.addr %s970, 32
          %s972 = scalar_lea.vmem [#allocation18], %s971
          %973 = dma.done %s969, 512
        $region116: #{tpu_custom_call.1} parent=107 // pred_fallthru
          _
        // Predicated region
        $region117: #{tpu_custom_call.1} parent=107 // pred_check
          %p974 = pneg %p326
        $region118: #{tpu_custom_call.1} parent=107 // pred_check_branch
          %976 = sbr.rel (%p974) target = $region120
        $region119: #{tpu_custom_call.1} parent=107 // pred_region
          %s977 = sand.u32 %s37, 1
          %s978 = scalar_lea.sflag [#allocation19], %s977
          %s979 = sand.u32 %s311, 1
          %s980 = smul.addr %s979, 32
          %s981 = scalar_lea.vmem [#allocation20], %s980
          %982 = dma.done %s978, 512
        $region120: #{tpu_custom_call.1} parent=107 // pred_fallthru
          _
      $region108: #{tpu_custom_call.1} parent=5 // pred_fallthru
        _
    $region6: #{tpu_custom_call.1} parent=1 // loop_footer
      %s35 = sadd.s32 1, %s31
    $region7: #{tpu_custom_call.1} parent=1 // loop_footer_branch
      %30 = sbr.rel target = $region3
    $region8: #{tpu_custom_call.1} parent=1 // loop_exit
      _
    %983 = vsyncpa [#allocation3], 1
    %s984 = scalar_lea.sflag [#allocation3], 1
    %985 = vsyncpa %s984, 1
    %986 = vsyncpa [#allocation6], 1
    %987 = vsyncpa [#allocation9], 1
    %988 = vsyncpa [#allocation12], 1
    %989 = vsyncpa [#allocation15], 1
    %990 = vsyncpa [#allocation4], 1
    %s991 = scalar_lea.sflag [#allocation4], 1
    %992 = vsyncpa %s991, 1
    %993 = vsyncpa [#allocation19], 1
    %s994 = scalar_lea.sflag [#allocation19], 1
    %995 = vsyncpa %s994, 1

</llo_original>
